<compile_context>
chip_gen: v6e
topology: v6e:2x2x1
jax: 0.10.0
libtpu: 0.0.40
codegen_flags: <defaults>
</compile_context>

<pallas_src>
import functools

import jax
import jax.numpy as jnp
from jax.experimental import pallas as pl
from jax.experimental.pallas import tpu as pltpu


def _round_up(n: int, m: int) -> int:
    return ((n + m - 1) // m) * m


def _neuralnet_kernel(x_ref, w1_ref, b1_ref, w2_ref, b2_ref, feat_ref, out_ref):
    # Feature layer: nn.Linear(in_size, ftdim) on the MXU.
    x = x_ref[...]                                                   # (TB, in_size)
    h = jnp.dot(x, w1_ref[...],
                preferred_element_type=jnp.float32) + b1_ref[...]    # (TB, ftdim)
    feat_ref[...] = h

    # Synthetic head: Linear(ftdim, 1) + sigmoid.
    # TODO(synk): the real head `self.fc` is user-provided at construction time.
    # An MXU matmul with output lane-width 1 wastes the systolic array, so the
    # head is a VPU multiply + cross-lane reduction (idle VALU/XLU slots).
    logits = jnp.sum(h * w2_ref[...], axis=-1, keepdims=True) + b2_ref[0, 0]  # (TB, 1)
    # Store lane-dense: batch on the lane axis -> unmasked vector stores.
    out_ref[...] = jax.nn.sigmoid(logits).T                          # (1, TB)


@functools.partial(jax.jit, static_argnames=("tile_b",))
def neuralnet_forward(x, w1, b1, w2, b2, *, tile_b=512):
    """Fused forward pass.

    x:  (B, in_size) f32
    w1: (in_size, ftdim) f32   (transposed vs. torch Linear weight)
    b1: (1, ftdim) f32
    w2: (ftdim, 1) f32         (synthetic head weight)
    b2: (1, 1) f32
    Returns (feat, out) == (forward_feat(x), forward(x)).
    """
    B, in_size = x.shape
    ftdim = w1.shape[1]

    # NOTE: for tiny batches (B << 128) plain XLA beats any Pallas launch;
    # callers with toy sizes can use the pure-JAX expression directly.
    tile_b = min(tile_b, max(8, _round_up(B, 8)))
    b_pad = _round_up(B, tile_b)
    if b_pad != B:
        x = jnp.pad(x, ((0, b_pad - B), (0, 0)))
    num_tiles = b_pad // tile_b

    w2_row = w2.reshape(1, ftdim)   # head weight as a lane row
    b2_s = b2.reshape(1, 1)         # scalar bias for SMEM

    feat, out_lane = pl.pallas_call(
        _neuralnet_kernel,
        grid=(num_tiles,),
        in_specs=[
            pl.BlockSpec((tile_b, in_size), lambda i: (i, 0)),      # x: pipelined
            pl.BlockSpec((in_size, ftdim), lambda i: (0, 0)),       # w1: resident
            pl.BlockSpec((1, ftdim), lambda i: (0, 0)),             # b1: resident
            pl.BlockSpec((1, ftdim), lambda i: (0, 0)),             # w2 row: resident
            pl.BlockSpec(memory_space=pltpu.SMEM),                  # b2: scalar in SMEM
        ],
        out_specs=(
            pl.BlockSpec((tile_b, ftdim), lambda i: (i, 0)),        # feat (pipelined)
            pl.BlockSpec((None, 1, tile_b), lambda i: (i, 0, 0)),   # out, lane-dense
        ),
        out_shape=(
            jax.ShapeDtypeStruct((b_pad, ftdim), jnp.float32),
            jax.ShapeDtypeStruct((num_tiles, 1, tile_b), jnp.float32),
        ),
        compiler_params=pltpu.CompilerParams(
            dimension_semantics=("parallel",),     # batch tiles shard across TCs (v7x)
            vmem_limit_bytes=32 * 1024 * 1024,     # explicit budget, safe on v5e/v6e/v7x
        ),
    )(x, w1, b1, w2_row, b2_s)

    feat = feat[:B]
    out = out_lane.reshape(-1)[:B].reshape(B, 1)
    return feat, out


if __name__ == "__main__":
    # shapes consistent with NeuralNet(in_size=16, bs=8, head=..., lr, ftdim=32);
    # batch chosen large enough to exercise tiling/padding (1000 -> 2 tiles of 512).
    B, in_size, ftdim, head_dim = 1000, 16, 32, 1

    key = jax.random.PRNGKey(0)
    kx, kw1, kb1, kw2, kb2 = jax.random.split(key, 5)

    x = jax.random.normal(kx, (B, in_size), dtype=jnp.float32)

    # deterministic synthetic parameter init (kaiming-uniform-ish, like torch.nn.Linear)
    bound1 = 1.0 / (in_size ** 0.5)
    w1 = jax.random.uniform(kw1, (in_size, ftdim), jnp.float32, -bound1, bound1)
    b1 = jax.random.uniform(kb1, (1, ftdim), jnp.float32, -bound1, bound1)

    bound2 = 1.0 / (ftdim ** 0.5)
    w2 = jax.random.uniform(kw2, (ftdim, head_dim), jnp.float32, -bound2, bound2)
    b2 = jax.random.uniform(kb2, (1, head_dim), jnp.float32, -bound2, bound2)

    feat, out = neuralnet_forward(x, w1, b1, w2, b2, tile_b=512)
    jax.block_until_ready((feat, out))

    # correctness check vs. pure-JAX reference
    feat_ref = x @ w1 + b1
    out_ref = jax.nn.sigmoid(feat_ref @ w2 + b2)
    assert feat.shape == (B, ftdim) and out.shape == (B, head_dim)
    assert jnp.allclose(feat, feat_ref, atol=1e-5), "feature mismatch"
    assert jnp.allclose(out, out_ref, atol=1e-5), "head output mismatch"

    print("KERNEL_OK")
</pallas_src>

<mosaic_0001>
module attributes {stable_mosaic.version = 11 : i64} {
  func.func @_neuralnet_kernel(%arg0: i32, %arg1: memref<512x16xf32, #tpu.memory_space<vmem>>, %arg2: memref<16x32xf32, #tpu.memory_space<vmem>>, %arg3: memref<1x32xf32, #tpu.memory_space<vmem>>, %arg4: memref<1x32xf32, #tpu.memory_space<vmem>>, %arg5: memref<1x1xf32, #tpu.memory_space<smem>>, %arg6: memref<512x32xf32, #tpu.memory_space<vmem>>, %arg7: memref<1x1x512xf32, #tpu.memory_space<vmem>>) attributes {dimension_semantics = [#tpu.dimension_semantics<parallel>], iteration_bounds = array<i64: 2>, scalar_prefetch = 0 : i64, scratch_operands = 0 : i64, tpu.core_type = #tpu.core_type<tc>, window_params = [{transform_indices = @transform_0, window_bounds = array<i64: 512, 16>}, {pipeline_mode = #tpu.pipeline_mode<synchronous>, transform_indices = @transform_1, window_bounds = array<i64: 16, 32>}, {pipeline_mode = #tpu.pipeline_mode<synchronous>, transform_indices = @transform_2, window_bounds = array<i64: 1, 32>}, {pipeline_mode = #tpu.pipeline_mode<synchronous>, transform_indices = @transform_3, window_bounds = array<i64: 1, 32>}, {transform_indices = @transform_4, window_bounds = array<i64: 1, 1>}, {transform_indices = @transform_5, window_bounds = array<i64: 512, 32>}, {transform_indices = @transform_6, window_bounds = array<i64: 1, 1, 512>}]} {
    %c0 = arith.constant 0 : index
    %c0_0 = arith.constant 0 : index
    %0 = vector.load %arg1[%c0, %c0_0] : memref<512x16xf32, #tpu.memory_space<vmem>>, vector<512x16xf32>
    %c0_1 = arith.constant 0 : index
    %c0_2 = arith.constant 0 : index
    %1 = vector.load %arg2[%c0_1, %c0_2] : memref<16x32xf32, #tpu.memory_space<vmem>>, vector<16x32xf32>
    %cst = arith.constant dense<0.000000e+00> : vector<512x32xf32>
    %2 = tpu.matmul %0, %1, %cst {dimension_numbers = #tpu.dot_dimension_numbers<[1], [0], [0], [1], [0, 0, 1, 1], [], []>} : vector<512x16xf32>, vector<16x32xf32>, vector<512x32xf32> -> vector<512x32xf32>
    %c0_3 = arith.constant 0 : index
    %c0_4 = arith.constant 0 : index
    %3 = vector.load %arg3[%c0_3, %c0_4] : memref<1x32xf32, #tpu.memory_space<vmem>>, vector<1x32xf32>
    %4 = vector.broadcast %3 : vector<1x32xf32> to vector<512x32xf32>
    %5 = arith.addf %2, %4 : vector<512x32xf32>
    %c0_5 = arith.constant 0 : index
    %c0_6 = arith.constant 0 : index
    %6 = vector.load %arg6[%c0_5, %c0_6] : memref<512x32xf32, #tpu.memory_space<vmem>>, vector<512x32xf32>
    tpu.vector_store %arg6[%c0_5, %c0_6], %5 {strides = array<i32>} : memref<512x32xf32, #tpu.memory_space<vmem>>, vector<512x32xf32>,
    %c0_7 = arith.constant 0 : index
    %c0_8 = arith.constant 0 : index
    %7 = vector.load %arg4[%c0_7, %c0_8] : memref<1x32xf32, #tpu.memory_space<vmem>>, vector<1x32xf32>
    %8 = vector.broadcast %7 : vector<1x32xf32> to vector<512x32xf32>
    %9 = arith.mulf %5, %8 : vector<512x32xf32>
    %cst_9 = arith.constant dense<0.000000e+00> : vector<512xf32>
    %10 = vector.multi_reduction <add>, %9, %cst_9 [1] : vector<512x32xf32> to vector<512xf32>
    %11 = vector.shape_cast %10 : vector<512xf32> to vector<512x1xf32>
    %c0_10 = arith.constant 0 : index
    %c0_11 = arith.constant 0 : index
    %12 = memref.load %arg5[%c0_10, %c0_11] : memref<1x1xf32, #tpu.memory_space<smem>>
    %13 = vector.broadcast %12 : f32 to vector<512x1xf32>
    %14 = arith.addf %11, %13 : vector<512x1xf32>
    %15 = arith.negf %14 : vector<512x1xf32>
    %16 = math.exp %15 : vector<512x1xf32>
    %cst_12 = arith.constant 1.000000e+00 : f32
    %17 = vector.broadcast %cst_12 : f32 to vector<512x1xf32>
    %18 = arith.addf %17, %16 : vector<512x1xf32>
    %19 = arith.divf %17, %18 : vector<512x1xf32>
    %20 = tpu.transpose %19, [1, 0] : vector<512x1xf32> -> vector<1x512xf32>
    %c0_13 = arith.constant 0 : index
    %c0_14 = arith.constant 0 : index
    %c0_15 = arith.constant 0 : index
    %21 = vector.load %arg7[%c0_13, %c0_14, %c0_15] : memref<1x1x512xf32, #tpu.memory_space<vmem>>, vector<1x1x512xf32>
    %22 = vector.shape_cast %21 : vector<1x1x512xf32> to vector<1x512xf32>
    %23 = vector.shape_cast %20 : vector<1x512xf32> to vector<1x1x512xf32>
    tpu.vector_store %arg7[%c0_13, %c0_14, %c0_15], %23 {strides = array<i32>} : memref<1x1x512xf32, #tpu.memory_space<vmem>>, vector<1x1x512xf32>,
    return
  }
  func.func @transform_0(%arg0: i32) -> (i32, i32) {
    %c0_i32 = arith.constant 0 : i32
    %c0_i32_0 = arith.constant 0 : i32
    return %arg0, %c0_i32 : i32, i32
  }
  func.func @transform_1(%arg0: i32) -> (i32, i32) {
    %c0_i32 = arith.constant 0 : i32
    %c0_i32_0 = arith.constant 0 : i32
    %c0_i32_1 = arith.constant 0 : i32
    return %c0_i32, %c0_i32_0 : i32, i32
  }
  func.func @transform_2(%arg0: i32) -> (i32, i32) {
    %c0_i32 = arith.constant 0 : i32
    %c0_i32_0 = arith.constant 0 : i32
    %c0_i32_1 = arith.constant 0 : i32
    return %c0_i32, %c0_i32_0 : i32, i32
  }
  func.func @transform_3(%arg0: i32) -> (i32, i32) {
    %c0_i32 = arith.constant 0 : i32
    %c0_i32_0 = arith.constant 0 : i32
    %c0_i32_1 = arith.constant 0 : i32
    return %c0_i32, %c0_i32_0 : i32, i32
  }
  func.func @transform_4(%arg0: i32) -> (i32, i32) {
    %c0_i32 = arith.constant 0 : i32
    %c0_i32_0 = arith.constant 0 : i32
    %c0_i32_1 = arith.constant 0 : i32
    return %c0_i32, %c0_i32_0 : i32, i32
  }
  func.func @transform_5(%arg0: i32) -> (i32, i32) {
    %c0_i32 = arith.constant 0 : i32
    %c0_i32_0 = arith.constant 0 : i32
    return %arg0, %c0_i32 : i32, i32
  }
  func.func @transform_6(%arg0: i32) -> (i32, i32, i32) {
    %c0_i32 = arith.constant 0 : i32
    %c0_i32_0 = arith.constant 0 : i32
    %c0_i32_1 = arith.constant 0 : i32
    return %arg0, %c0_i32, %c0_i32_0 : i32, i32, i32
  }
}

</mosaic_0001>

<llo_original>
// kernel: neuralnet_forward.1
$region0: #{neuralnet_forward.1}
  #allocation0 [shape = 'u32[]', space=smem, size = 0x4, offset = 0x4, fixed_abs, tag = 'smem constant byte address 0x4 - core index']
  #allocation1 [shape = 'u32[144,128]{1,0:T(1,128)}', space=vmem, size = 0x12000, scoped, tag = 'internal scratch']
  #allocation2 [shape = 'f32[1,1]{1,0:T(1,128)S(6)}', space=smem, size = 0x200, scoped, tag = 'scoped memory for neuralnet_forward.1']
  %s0 = inlined_call_operand.vmem [shape: f32[1024,16], index: 0, kind: input, shape index: {}]
  %s1 = inlined_call_operand.vmem [shape: f32[16,32], index: 1, kind: input, shape index: {}]
  %s2 = inlined_call_operand.vmem [shape: f32[1,32], index: 2, kind: input, shape index: {}]
  %s3 = inlined_call_operand.vmem [shape: f32[1,32], index: 3, kind: input, shape index: {}]
  %s4 = inlined_call_operand.<no memory space> [shape: f32[1,1], index: 4, kind: input, shape index: {}]
  %s5 = inlined_call_operand.vmem [shape: f32[1024,32], index: 5, kind: output, shape index: {0}]
  %s6 = inlined_call_operand.hbm [shape: f32[2,1,512], index: 6, kind: output, shape index: {1}]
  %7 = xla_tuple %s5, %s6
  %s8 = sld [smem:[#allocation0]]
  $region61: #{neuralnet_forward.1} parent=0
    _
  %s10 = ssub.s32 1, %s8
  %s11 = scalar_select 0, %s10, %s8
  %12 = sst [smem:[#allocation2]] %s4
  $region1: #{neuralnet_forward.1} parent=0
    #allocation3 [shape = 'u8[4096]{0}', space=vmem, size = 0x1000, scoped, tag = 'output window, operand 1']
    #allocation4 [shape = 's32[2]{0}', space=sflag, size = 0x8, scoped, tag = 'scoped memory for neuralnet_forward.1']
    %13 = vsyncpa [#allocation4], 0
    %s14 = scalar_lea.sflag [#allocation4], 1
    %15 = vsyncpa %s14, 0
    loop: start=0, step=1, limit=4
    $region2: #{neuralnet_forward.1} parent=1 // loop_pre_header
      _
    $region3: #{neuralnet_forward.1} parent=1 // loop_header
      %s17 = sphi 0, %s21
      %p18 = scmp.ge.s32.totalorder %s17, 4
      %s27 = sphi 0, %s29
      %s30 = sphi 0, %s27
      %s31 = sphi 0, %s30
      %s47 = sphi 0, %s31
      %s51 = sphi 0, %s51
      %s53 = sphi 0, %s51
      %s54 = sphi 0, %s53
      %s68 = sphi 0, %s54
      %s72 = sphi 0, %s72
      %s74 = sphi 0, %s72
      %s75 = sphi 0, %s74
      %s89 = sphi 0, %s75
      %s93 = sphi 0, %s93
      %s95 = sphi 0, %s93
      %s96 = sphi 0, %s95
      %s110 = sphi 0, %s96
      %s114 = sphi 0, %s114
      %s116 = sphi 0, %s114
      %s117 = sphi 0, %s116
      %s131 = sphi 0, %s117
      %s137 = sphi 0, %s139
      %s140 = sphi 0, %s137
      %s141 = sphi 0, %s140
      %s157 = sphi 0, %s141
      %s163 = sphi 0, %s165
      %s166 = sphi 0, %s163
      %s167 = sphi 0, %s166
      %s183 = sphi 0, %s167
    $region4: #{neuralnet_forward.1} parent=1 // loop_header_branch
      %20 = sbr.rel (%p18) target = $region8
    $region5: #{neuralnet_forward.1} parent=1 // loop_body
      %s22 = ssub.s32 %s17, 1
      %s23 = ssub.s32 %s17, 2
      %s24 = sadd.s32 %s17, 1
      %s25 = ssub.s32 %s17, %s24
      %p26 = scmp.eq.s32.totalorder %s25, 0
      %s28 = sadd.s32 %s27, 1
      %s29 = scalar_select %p26, %s27, %s28
      %p32 = pneg %p26
      %p33 = scmp.eq.s32.totalorder %s17, 1
      %p34 = por %p32, %p33
      %p35 = scmp.ne.s32.totalorder %s27, %s30
      %p36 = scmp.eq.s32.totalorder %s17, 0
      %p37 = por %p35, %p36
      %p38 = scmp.ne.s32.totalorder %s27, %s30
      %p39 = scmp.eq.s32.totalorder %s22, 1
      %p40 = por %p38, %p39
      %p41 = scmp.ne.s32.totalorder %s30, %s31
      %p42 = scmp.eq.s32.totalorder %s22, 0
      %p43 = por %p41, %p42
      %p44 = scmp.ne.s32.totalorder %s30, %s31
      %p45 = scmp.eq.s32.totalorder %s23, 1
      %p46 = por %p44, %p45
      %p48 = scmp.ne.s32.totalorder %s31, %s47
      %p49 = scmp.eq.s32.totalorder %s23, 0
      %p50 = por %p48, %p49
      %s52 = sadd.s32 %s51, 1
      %p55 = scmp.eq.s32.totalorder %s17, 1
      %p56 = scmp.ne.s32.totalorder %s51, %s53
      %p57 = scmp.eq.s32.totalorder %s17, 0
      %p58 = por %p56, %p57
      %p59 = scmp.ne.s32.totalorder %s51, %s53
      %p60 = scmp.eq.s32.totalorder %s22, 1
      %p61 = por %p59, %p60
      %p62 = scmp.ne.s32.totalorder %s53, %s54
      %p63 = scmp.eq.s32.totalorder %s22, 0
      %p64 = por %p62, %p63
      %p65 = scmp.ne.s32.totalorder %s53, %s54
      %p66 = scmp.eq.s32.totalorder %s23, 1
      %p67 = por %p65, %p66
      %p69 = scmp.ne.s32.totalorder %s54, %s68
      %p70 = scmp.eq.s32.totalorder %s23, 0
      %p71 = por %p69, %p70
      %s73 = sadd.s32 %s72, 1
      %p76 = scmp.eq.s32.totalorder %s17, 1
      %p77 = scmp.ne.s32.totalorder %s72, %s74
      %p78 = scmp.eq.s32.totalorder %s17, 0
      %p79 = por %p77, %p78
      %p80 = scmp.ne.s32.totalorder %s72, %s74
      %p81 = scmp.eq.s32.totalorder %s22, 1
      %p82 = por %p80, %p81
      %p83 = scmp.ne.s32.totalorder %s74, %s75
      %p84 = scmp.eq.s32.totalorder %s22, 0
      %p85 = por %p83, %p84
      %p86 = scmp.ne.s32.totalorder %s74, %s75
      %p87 = scmp.eq.s32.totalorder %s23, 1
      %p88 = por %p86, %p87
      %p90 = scmp.ne.s32.totalorder %s75, %s89
      %p91 = scmp.eq.s32.totalorder %s23, 0
      %p92 = por %p90, %p91
      %s94 = sadd.s32 %s93, 1
      %p97 = scmp.eq.s32.totalorder %s17, 1
      %p98 = scmp.ne.s32.totalorder %s93, %s95
      %p99 = scmp.eq.s32.totalorder %s17, 0
      %p100 = por %p98, %p99
      %p101 = scmp.ne.s32.totalorder %s93, %s95
      %p102 = scmp.eq.s32.totalorder %s22, 1
      %p103 = por %p101, %p102
      %p104 = scmp.ne.s32.totalorder %s95, %s96
      %p105 = scmp.eq.s32.totalorder %s22, 0
      %p106 = por %p104, %p105
      %p107 = scmp.ne.s32.totalorder %s95, %s96
      %p108 = scmp.eq.s32.totalorder %s23, 1
      %p109 = por %p107, %p108
      %p111 = scmp.ne.s32.totalorder %s96, %s110
      %p112 = scmp.eq.s32.totalorder %s23, 0
      %p113 = por %p111, %p112
      %s115 = sadd.s32 %s114, 1
      %p118 = scmp.eq.s32.totalorder %s17, 1
      %p119 = scmp.ne.s32.totalorder %s114, %s116
      %p120 = scmp.eq.s32.totalorder %s17, 0
      %p121 = por %p119, %p120
      %p122 = scmp.ne.s32.totalorder %s114, %s116
      %p123 = scmp.eq.s32.totalorder %s22, 1
      %p124 = por %p122, %p123
      %p125 = scmp.ne.s32.totalorder %s116, %s117
      %p126 = scmp.eq.s32.totalorder %s22, 0
      %p127 = por %p125, %p126
      %p128 = scmp.ne.s32.totalorder %s116, %s117
      %p129 = scmp.eq.s32.totalorder %s23, 1
      %p130 = por %p128, %p129
      %p132 = scmp.ne.s32.totalorder %s117, %s131
      %p133 = scmp.eq.s32.totalorder %s23, 0
      %p134 = por %p132, %p133
      %s135 = ssub.s32 %s17, %s24
      %p136 = scmp.eq.s32.totalorder %s135, 0
      %s138 = sadd.s32 %s137, 1
      %s139 = scalar_select %p136, %s137, %s138
      %p142 = pneg %p136
      %p143 = scmp.eq.s32.totalorder %s17, 1
      %p144 = por %p142, %p143
      %p145 = scmp.ne.s32.totalorder %s137, %s140
      %p146 = scmp.eq.s32.totalorder %s17, 0
      %p147 = por %p145, %p146
      %p148 = scmp.ne.s32.totalorder %s137, %s140
      %p149 = scmp.eq.s32.totalorder %s22, 1
      %p150 = por %p148, %p149
      %p151 = scmp.ne.s32.totalorder %s140, %s141
      %p152 = scmp.eq.s32.totalorder %s22, 0
      %p153 = por %p151, %p152
      %p154 = scmp.ne.s32.totalorder %s140, %s141
      %p155 = scmp.eq.s32.totalorder %s23, 1
      %p156 = por %p154, %p155
      %p158 = scmp.ne.s32.totalorder %s141, %s157
      %p159 = scmp.eq.s32.totalorder %s23, 0
      %p160 = por %p158, %p159
      %s161 = ssub.s32 %s17, %s24
      %p162 = scmp.eq.s32.totalorder %s161, 0
      %s164 = sadd.s32 %s163, 1
      %s165 = scalar_select %p162, %s163, %s164
      %p168 = pneg %p162
      %p169 = scmp.eq.s32.totalorder %s17, 1
      %p170 = por %p168, %p169
      %p171 = scmp.ne.s32.totalorder %s163, %s166
      %p172 = scmp.eq.s32.totalorder %s17, 0
      %p173 = por %p171, %p172
      %p174 = scmp.ne.s32.totalorder %s163, %s166
      %p175 = scmp.eq.s32.totalorder %s22, 1
      %p176 = por %p174, %p175
      %p177 = scmp.ne.s32.totalorder %s166, %s167
      %p178 = scmp.eq.s32.totalorder %s22, 0
      %p179 = por %p177, %p178
      %p180 = scmp.ne.s32.totalorder %s166, %s167
      %p181 = scmp.eq.s32.totalorder %s23, 1
      %p182 = por %p180, %p181
      %p184 = scmp.ne.s32.totalorder %s167, %s183
      %p185 = scmp.eq.s32.totalorder %s23, 0
      %p186 = por %p184, %p185
      %p187 = scmp.le.s32.totalorder 1, %s17
      %p188 = scmp.lt.s32.totalorder %s17, 3
      %p189 = pnand %p187, %p188
      %p190 = pneg %p189
      // Predicated region
      $region9: #{neuralnet_forward.1} parent=5 // pred_check
        _
      $region10: #{neuralnet_forward.1} parent=5 // pred_check_branch
        %192 = sbr.rel (%p189) target = $region12
      $region11: #{neuralnet_forward.1} parent=5 // pred_region
        %s193 = ssub.s32 %s17, 1
        // Predicated region
        $region13: #{neuralnet_forward.1} parent=11 // pred_check
          %p194 = pneg %p64
        $region14: #{neuralnet_forward.1} parent=11 // pred_check_branch
          %196 = sbr.rel (%p194) target = $region16
        $region15: #{neuralnet_forward.1} parent=11 // pred_region
          _
        $region16: #{neuralnet_forward.1} parent=11 // pred_fallthru
          _
        // Predicated region
        $region17: #{neuralnet_forward.1} parent=11 // pred_check
          %p197 = pneg %p85
        $region18: #{neuralnet_forward.1} parent=11 // pred_check_branch
          %199 = sbr.rel (%p197) target = $region20
        $region19: #{neuralnet_forward.1} parent=11 // pred_region
          _
        $region20: #{neuralnet_forward.1} parent=11 // pred_fallthru
          _
        // Predicated region
        $region21: #{neuralnet_forward.1} parent=11 // pred_check
          %p200 = pneg %p106
        $region22: #{neuralnet_forward.1} parent=11 // pred_check_branch
          %202 = sbr.rel (%p200) target = $region24
        $region23: #{neuralnet_forward.1} parent=11 // pred_region
          _
        $region24: #{neuralnet_forward.1} parent=11 // pred_fallthru
          _
        // Predicated region
        $region25: #{neuralnet_forward.1} parent=11 // pred_check
          %p203 = pneg %p127
        $region26: #{neuralnet_forward.1} parent=11 // pred_check_branch
          %205 = sbr.rel (%p203) target = $region28
        $region27: #{neuralnet_forward.1} parent=11 // pred_region
          _
        $region28: #{neuralnet_forward.1} parent=11 // pred_fallthru
          _
      $region12: #{neuralnet_forward.1} parent=5 // pred_fallthru
        _
      %p206 = scmp.lt.s32.totalorder %s17, 2
      // Predicated region
      $region29: #{neuralnet_forward.1} parent=5 // pred_check
        %p207 = pneg %p206
      $region30: #{neuralnet_forward.1} parent=5 // pred_check_branch
        %209 = sbr.rel (%p207) target = $region32
      $region31: #{neuralnet_forward.1} parent=5 // pred_region
        // Predicated region
        $region33: #{neuralnet_forward.1} parent=31 // pred_check
          %p210 = pneg %p37
        $region34: #{neuralnet_forward.1} parent=31 // pred_check_branch
          %212 = sbr.rel (%p210) target = $region36
        $region35: #{neuralnet_forward.1} parent=31 // pred_region
          %s213 = smul.u32 64, %s17
          %p214 = scmp.lt.s32.totalorder %s213, 127
          %s215 = scalar_select %p214, %s213, 127
          %s216 = smul.addr %s215, 8
          %s217 = scalar_lea.vmem %s0, %s216
          %s218 = smul.u32 64, %s17
        $region36: #{neuralnet_forward.1} parent=31 // pred_fallthru
          _
      $region32: #{neuralnet_forward.1} parent=5 // pred_fallthru
        _
      %p219 = scmp.le.s32.totalorder 1, %s17
      %p220 = scmp.lt.s32.totalorder %s17, 3
      %p221 = pnand %p219, %p220
      %p222 = pneg %p221
      // Predicated region
      $region37: #{neuralnet_forward.1} parent=5 // pred_check
        _
      $region38: #{neuralnet_forward.1} parent=5 // pred_check_branch
        %224 = sbr.rel (%p221) target = $region40
      $region39: #{neuralnet_forward.1} parent=5 // pred_region
        %s225 = ssub.s32 %s17, 1
        %s226 = smul.u32 64, %s22
        %p227 = scmp.lt.s32.totalorder %s226, 127
        %s228 = scalar_select %p227, %s226, 127
        %s229 = smul.addr %s228, 8
        %s230 = scalar_lea.vmem %s0, %s229
        %p231 = pneg %p43
        %p232 = pneg %p40
        %p233 = pneg %p64
        %p234 = pneg %p61
        %p235 = pneg %p85
        %p236 = pneg %p82
        %p237 = pneg %p106
        %p238 = pneg %p103
        %p239 = pneg %p127
        %p240 = pneg %p124
        %p241 = pneg %p153
        %p242 = pneg %p150
        %s243 = smul.u32 64, %s22
        %p244 = scmp.lt.s32.totalorder %s243, 127
        %s245 = scalar_select %p244, %s243, 127
        %s246 = smul.addr %s245, 8
        %s247 = scalar_lea.vmem %s5, %s246
        %p248 = pneg %p179
        %p249 = pneg %p176
        %s250 = sand.u32 %s166, 1
        %s251 = scalar_lea.sflag [#allocation4], %s250
        %s252 = sand.u32 %s166, 1
        %s253 = smul.addr %s252, 4
        %s254 = scalar_lea.vmem [#allocation3], %s253
        %s255 = smul.u32 64, %s22
        %p256 = scmp.lt.s32.totalorder %s255, 127
        %s257 = scalar_select %p256, %s255, 127
        %s258 = smul.addr %s257, 8
        %s259 = scalar_lea.vmem %s0, %s258
        %s260 = smul.u32 64, %s22
        %s261 = smul.u32 64, %s22
        %p262 = scmp.lt.s32.totalorder %s261, 127
        %s263 = scalar_select %p262, %s261, 127
        %s264 = smul.addr %s263, 8
        %s265 = scalar_lea.vmem %s5, %s264
        %s266 = smul.u32 64, %s22
        %v267 = vld [vmem:[%s259] sm:$0xff]
        %v268 = vld [vmem:[%s259 + $0x8] sm:$0xff]
        %v269 = vld [vmem:[%s259 + $0x10] sm:$0xff]
        %v270 = vld [vmem:[%s259 + $0x18] sm:$0xff]
        %v271 = vld [vmem:[%s259 + $0x20] sm:$0xff]
        %v272 = vld [vmem:[%s259 + $0x28] sm:$0xff]
        %v273 = vld [vmem:[%s259 + $0x30] sm:$0xff]
        %v274 = vld [vmem:[%s259 + $0x38] sm:$0xff]
        %v275 = vld [vmem:[%s259 + $0x40] sm:$0xff]
        %v276 = vld [vmem:[%s259 + $0x48] sm:$0xff]
        %v277 = vld [vmem:[%s259 + $0x50] sm:$0xff]
        %v278 = vld [vmem:[%s259 + $0x58] sm:$0xff]
        %v279 = vld [vmem:[%s259 + $0x60] sm:$0xff]
        %v280 = vld [vmem:[%s259 + $0x68] sm:$0xff]
        %v281 = vld [vmem:[%s259 + $0x70] sm:$0xff]
        %v282 = vld [vmem:[%s259 + $0x78] sm:$0xff]
        %v283 = vld [vmem:[%s259 + $0x80] sm:$0xff]
        %v284 = vld [vmem:[%s259 + $0x88] sm:$0xff]
        %v285 = vld [vmem:[%s259 + $0x90] sm:$0xff]
        %v286 = vld [vmem:[%s259 + $0x98] sm:$0xff]
        %v287 = vld [vmem:[%s259 + $0xa0] sm:$0xff]
        %v288 = vld [vmem:[%s259 + $0xa8] sm:$0xff]
        %v289 = vld [vmem:[%s259 + $0xb0] sm:$0xff]
        %v290 = vld [vmem:[%s259 + $0xb8] sm:$0xff]
        %v291 = vld [vmem:[%s259 + $0xc0] sm:$0xff]
        %v292 = vld [vmem:[%s259 + $0xc8] sm:$0xff]
        %v293 = vld [vmem:[%s259 + $0xd0] sm:$0xff]
        %v294 = vld [vmem:[%s259 + $0xd8] sm:$0xff]
        %v295 = vld [vmem:[%s259 + $0xe0] sm:$0xff]
        %v296 = vld [vmem:[%s259 + $0xe8] sm:$0xff]
        %v297 = vld [vmem:[%s259 + $0xf0] sm:$0xff]
        %v298 = vld [vmem:[%s259 + $0xf8] sm:$0xff]
        %v299 = vld [vmem:[%s259 + $0x100] sm:$0xff]
        %v300 = vld [vmem:[%s259 + $0x108] sm:$0xff]
        %v301 = vld [vmem:[%s259 + $0x110] sm:$0xff]
        %v302 = vld [vmem:[%s259 + $0x118] sm:$0xff]
        %v303 = vld [vmem:[%s259 + $0x120] sm:$0xff]
        %v304 = vld [vmem:[%s259 + $0x128] sm:$0xff]
        %v305 = vld [vmem:[%s259 + $0x130] sm:$0xff]
        %v306 = vld [vmem:[%s259 + $0x138] sm:$0xff]
        %v307 = vld [vmem:[%s259 + $0x140] sm:$0xff]
        %v308 = vld [vmem:[%s259 + $0x148] sm:$0xff]
        %v309 = vld [vmem:[%s259 + $0x150] sm:$0xff]
        %v310 = vld [vmem:[%s259 + $0x158] sm:$0xff]
        %v311 = vld [vmem:[%s259 + $0x160] sm:$0xff]
        %v312 = vld [vmem:[%s259 + $0x168] sm:$0xff]
        %v313 = vld [vmem:[%s259 + $0x170] sm:$0xff]
        %v314 = vld [vmem:[%s259 + $0x178] sm:$0xff]
        %v315 = vld [vmem:[%s259 + $0x180] sm:$0xff]
        %v316 = vld [vmem:[%s259 + $0x188] sm:$0xff]
        %v317 = vld [vmem:[%s259 + $0x190] sm:$0xff]
        %v318 = vld [vmem:[%s259 + $0x198] sm:$0xff]
        %v319 = vld [vmem:[%s259 + $0x1a0] sm:$0xff]
        %v320 = vld [vmem:[%s259 + $0x1a8] sm:$0xff]
        %v321 = vld [vmem:[%s259 + $0x1b0] sm:$0xff]
        %v322 = vld [vmem:[%s259 + $0x1b8] sm:$0xff]
        %v323 = vld [vmem:[%s259 + $0x1c0] sm:$0xff]
        %v324 = vld [vmem:[%s259 + $0x1c8] sm:$0xff]
        %v325 = vld [vmem:[%s259 + $0x1d0] sm:$0xff]
        %v326 = vld [vmem:[%s259 + $0x1d8] sm:$0xff]
        %v327 = vld [vmem:[%s259 + $0x1e0] sm:$0xff]
        %v328 = vld [vmem:[%s259 + $0x1e8] sm:$0xff]
        %v329 = vld [vmem:[%s259 + $0x1f0] sm:$0xff]
        %v330 = vld [vmem:[%s259 + $0x1f8] sm:$0xff]
        %v331 = vld [vmem:[%s1] sm:$0xff]
        %v332 = vld [vmem:[%s1 + $0x8] sm:$0xff]
        %v333 = vld [vmem:[%s2] sm:$0x1]
        %v335 = vlaneseq
        %v336 = vshrl.u32 %v335, 7
        %v337 = vsub.s32 0, %v336
        %v338 = vrot.slane %v333, %v337
        %vm340 = vcmask 130048
        %v342 = vsel %vm340, %v267, 0
        %v345 = vsel %vm340, %v268, 0
        %v348 = vsel %vm340, %v269, 0
        %v351 = vsel %vm340, %v270, 0
        %v354 = vsel %vm340, %v271, 0
        %v357 = vsel %vm340, %v272, 0
        %v360 = vsel %vm340, %v273, 0
        %v363 = vsel %vm340, %v274, 0
        %v366 = vsel %vm340, %v275, 0
        %v369 = vsel %vm340, %v276, 0
        %v372 = vsel %vm340, %v277, 0
        %v375 = vsel %vm340, %v278, 0
        %v378 = vsel %vm340, %v279, 0
        %v381 = vsel %vm340, %v280, 0
        %v384 = vsel %vm340, %v281, 0
        %v387 = vsel %vm340, %v282, 0
        %v390 = vsel %vm340, %v283, 0
        %v393 = vsel %vm340, %v284, 0
        %v396 = vsel %vm340, %v285, 0
        %v399 = vsel %vm340, %v286, 0
        %v402 = vsel %vm340, %v287, 0
        %v405 = vsel %vm340, %v288, 0
        %v408 = vsel %vm340, %v289, 0
        %v411 = vsel %vm340, %v290, 0
        %v414 = vsel %vm340, %v291, 0
        %v417 = vsel %vm340, %v292, 0
        %v420 = vsel %vm340, %v293, 0
        %v423 = vsel %vm340, %v294, 0
        %v426 = vsel %vm340, %v295, 0
        %v429 = vsel %vm340, %v296, 0
        %v432 = vsel %vm340, %v297, 0
        %v435 = vsel %vm340, %v298, 0
        %v438 = vsel %vm340, %v299, 0
        %v441 = vsel %vm340, %v300, 0
        %v444 = vsel %vm340, %v301, 0
        %v447 = vsel %vm340, %v302, 0
        %v450 = vsel %vm340, %v303, 0
        %v453 = vsel %vm340, %v304, 0
        %v456 = vsel %vm340, %v305, 0
        %v459 = vsel %vm340, %v306, 0
        %v462 = vsel %vm340, %v307, 0
        %v465 = vsel %vm340, %v308, 0
        %v468 = vsel %vm340, %v309, 0
        %v471 = vsel %vm340, %v310, 0
        %v474 = vsel %vm340, %v311, 0
        %v477 = vsel %vm340, %v312, 0
        %v480 = vsel %vm340, %v313, 0
        %v483 = vsel %vm340, %v314, 0
        %v486 = vsel %vm340, %v315, 0
        %v489 = vsel %vm340, %v316, 0
        %v492 = vsel %vm340, %v317, 0
        %v495 = vsel %vm340, %v318, 0
        %v498 = vsel %vm340, %v319, 0
        %v501 = vsel %vm340, %v320, 0
        %v504 = vsel %vm340, %v321, 0
        %v507 = vsel %vm340, %v322, 0
        %v510 = vsel %vm340, %v323, 0
        %v513 = vsel %vm340, %v324, 0
        %v516 = vsel %vm340, %v325, 0
        %v519 = vsel %vm340, %v326, 0
        %v522 = vsel %vm340, %v327, 0
        %v525 = vsel %vm340, %v328, 0
        %v528 = vsel %vm340, %v329, 0
        %v531 = vsel %vm340, %v330, 0
        %533 = vmatprep.subr.mxu0 0.0
        %534 = vmatpush1.msra.mxu0 0.0
        %535 = vmatprep.subr.mxu0 0.0
        %536 = vmatpush1.msra.mxu0 0.0
        %537 = vmatprep.subr.mxu0 0.0
        %538 = vmatpush1.msra.mxu0 0.0
        %539 = vmatprep.subr.mxu0 0.0
        %540 = vmatpush1.msra.mxu0 0.0
        %541 = vmatprep.subr.mxu0 0.0
        %542 = vmatpush1.msra.mxu0 0.0
        %543 = vmatprep.subr.mxu0 0.0
        %544 = vmatpush1.msra.mxu0 0.0
        %545 = vmatprep.subr.mxu0 0.0
        %546 = vmatpush1.msra.mxu0 0.0
        %547 = vmatprep.subr.mxu0 0.0
        %548 = vmatpush1.msra.mxu0 0.0
        %549 = vmatprep.subr.mxu0 0.0
        %550 = vmatpush1.msra.mxu0 0.0
        %551 = vmatprep.subr.mxu0 0.0
        %552 = vmatpush1.msra.mxu0 0.0
        %553 = vmatprep.subr.mxu0 0.0
        %554 = vmatpush1.msra.mxu0 0.0
        %555 = vmatprep.subr.mxu0 0.0
        %556 = vmatpush1.msra.mxu0 0.0
        %557 = vmatprep.subr.mxu0 0.0
        %558 = vmatpush1.msra.mxu0 0.0
        %559 = vmatprep.subr.mxu0 0.0
        %560 = vmatpush1.msra.mxu0 0.0
        %561 = vmatprep.subr.mxu0 0.0
        %562 = vmatpush1.msra.mxu0 %v332
        %563 = vmatprep.subr.mxu0 0.0
        %564 = vmatpush1.msra.mxu0 %v331
        %565 = vmatprep.subr.mxu0 0.0
        %566 = vmatpush2.msra.mxu0 0.0
        %567 = vmatprep.subr.mxu0 0.0
        %568 = vmatpush2.msra.mxu0 0.0
        %569 = vmatprep.subr.mxu0 0.0
        %570 = vmatpush2.msra.mxu0 0.0
        %571 = vmatprep.subr.mxu0 0.0
        %572 = vmatpush2.msra.mxu0 0.0
        %573 = vmatprep.subr.mxu0 0.0
        %574 = vmatpush2.msra.mxu0 0.0
        %575 = vmatprep.subr.mxu0 0.0
        %576 = vmatpush2.msra.mxu0 0.0
        %577 = vmatprep.subr.mxu0 0.0
        %578 = vmatpush2.msra.mxu0 0.0
        %579 = vmatprep.subr.mxu0 0.0
        %580 = vmatpush2.msra.mxu0 0.0
        %581 = vmatprep.subr.mxu0 0.0
        %582 = vmatpush2.msra.mxu0 0.0
        %583 = vmatprep.subr.mxu0 0.0
        %584 = vmatpush2.msra.mxu0 0.0
        %585 = vmatprep.subr.mxu0 0.0
        %586 = vmatpush2.msra.mxu0 0.0
        %587 = vmatprep.subr.mxu0 0.0
        %588 = vmatpush2.msra.mxu0 0.0
        %589 = vmatprep.subr.mxu0 0.0
        %590 = vmatpush2.msra.mxu0 0.0
        %591 = vmatprep.subr.mxu0 0.0
        %592 = vmatpush2.msra.mxu0 0.0
        %593 = vmatprep.subr.mxu0 0.0
        %594 = vmatpush2.msra.mxu0 0.0
        %595 = vmatprep.subr.mxu0 0.0
        %596 = vmatpush2.msra.mxu0 0.0
        %597 = vmatprep.mubr.f32.mxu0 0.0
        %598 = vmatmul.mubr.f32.gmra.mxu0 %v342
        %v599 = vpop.f32.mrf.mxu0
        %v600 = vadd.f32 %v338, %v599
        %v601 = vpop.f32.mrf.mxu0
        %602 = vmatprep.mubr.f32.mxu0 0.0
        %603 = vmatmul.mubr.f32.gmra.mxu0 %v345
        %v604 = vpop.f32.mrf.mxu0
        %v605 = vadd.f32 %v338, %v604
        %v606 = vpop.f32.mrf.mxu0
        %607 = vmatprep.mubr.f32.mxu0 0.0
        %608 = vmatmul.mubr.f32.gmra.mxu0 %v348
        %v609 = vpop.f32.mrf.mxu0
        %v610 = vadd.f32 %v338, %v609
        %v611 = vpop.f32.mrf.mxu0
        %612 = vmatprep.mubr.f32.mxu0 0.0
        %613 = vmatmul.mubr.f32.gmra.mxu0 %v351
        %v614 = vpop.f32.mrf.mxu0
        %v615 = vadd.f32 %v338, %v614
        %v616 = vpop.f32.mrf.mxu0
        %617 = vmatprep.mubr.f32.mxu0 0.0
        %618 = vmatmul.mubr.f32.gmra.mxu0 %v354
        %v619 = vpop.f32.mrf.mxu0
        %v620 = vadd.f32 %v338, %v619
        %v621 = vpop.f32.mrf.mxu0
        %622 = vmatprep.mubr.f32.mxu0 0.0
        %623 = vmatmul.mubr.f32.gmra.mxu0 %v357
        %v624 = vpop.f32.mrf.mxu0
        %v625 = vadd.f32 %v338, %v624
        %v626 = vpop.f32.mrf.mxu0
        %627 = vmatprep.mubr.f32.mxu0 0.0
        %628 = vmatmul.mubr.f32.gmra.mxu0 %v360
        %v629 = vpop.f32.mrf.mxu0
        %v630 = vadd.f32 %v338, %v629
        %v631 = vpop.f32.mrf.mxu0
        %632 = vmatprep.mubr.f32.mxu0 0.0
        %633 = vmatmul.mubr.f32.gmra.mxu0 %v363
        %v634 = vpop.f32.mrf.mxu0
        %v635 = vadd.f32 %v338, %v634
        %v636 = vpop.f32.mrf.mxu0
        %637 = vmatprep.mubr.f32.mxu0 0.0
        %638 = vmatmul.mubr.f32.gmra.mxu0 %v366
        %v639 = vpop.f32.mrf.mxu0
        %v640 = vadd.f32 %v338, %v639
        %v641 = vpop.f32.mrf.mxu0
        %642 = vmatprep.mubr.f32.mxu0 0.0
        %643 = vmatmul.mubr.f32.gmra.mxu0 %v369
        %v644 = vpop.f32.mrf.mxu0
        %v645 = vadd.f32 %v338, %v644
        %v646 = vpop.f32.mrf.mxu0
        %647 = vmatprep.mubr.f32.mxu0 0.0
        %648 = vmatmul.mubr.f32.gmra.mxu0 %v372
        %v649 = vpop.f32.mrf.mxu0
        %v650 = vadd.f32 %v338, %v649
        %v651 = vpop.f32.mrf.mxu0
        %652 = vmatprep.mubr.f32.mxu0 0.0
        %653 = vmatmul.mubr.f32.gmra.mxu0 %v375
        %v654 = vpop.f32.mrf.mxu0
        %v655 = vadd.f32 %v338, %v654
        %v656 = vpop.f32.mrf.mxu0
        %657 = vmatprep.mubr.f32.mxu0 0.0
        %658 = vmatmul.mubr.f32.gmra.mxu0 %v378
        %v659 = vpop.f32.mrf.mxu0
        %v660 = vadd.f32 %v338, %v659
        %v661 = vpop.f32.mrf.mxu0
        %662 = vmatprep.mubr.f32.mxu0 0.0
        %663 = vmatmul.mubr.f32.gmra.mxu0 %v381
        %v664 = vpop.f32.mrf.mxu0
        %v665 = vadd.f32 %v338, %v664
        %v666 = vpop.f32.mrf.mxu0
        %667 = vmatprep.mubr.f32.mxu0 0.0
        %668 = vmatmul.mubr.f32.gmra.mxu0 %v384
        %v669 = vpop.f32.mrf.mxu0
        %v670 = vadd.f32 %v338, %v669
        %v671 = vpop.f32.mrf.mxu0
        %672 = vmatprep.mubr.f32.mxu0 0.0
        %673 = vmatmul.mubr.f32.gmra.mxu0 %v387
        %v674 = vpop.f32.mrf.mxu0
        %v675 = vadd.f32 %v338, %v674
        %v676 = vpop.f32.mrf.mxu0
        %677 = vmatprep.mubr.f32.mxu0 0.0
        %678 = vmatmul.mubr.f32.gmra.mxu0 %v390
        %v679 = vpop.f32.mrf.mxu0
        %v680 = vadd.f32 %v338, %v679
        %v681 = vpop.f32.mrf.mxu0
        %682 = vmatprep.mubr.f32.mxu0 0.0
        %683 = vmatmul.mubr.f32.gmra.mxu0 %v393
        %v684 = vpop.f32.mrf.mxu0
        %v685 = vadd.f32 %v338, %v684
        %v686 = vpop.f32.mrf.mxu0
        %687 = vmatprep.mubr.f32.mxu0 0.0
        %688 = vmatmul.mubr.f32.gmra.mxu0 %v396
        %v689 = vpop.f32.mrf.mxu0
        %v690 = vadd.f32 %v338, %v689
        %v691 = vpop.f32.mrf.mxu0
        %692 = vmatprep.mubr.f32.mxu0 0.0
        %693 = vmatmul.mubr.f32.gmra.mxu0 %v399
        %v694 = vpop.f32.mrf.mxu0
        %v695 = vadd.f32 %v338, %v694
        %v696 = vpop.f32.mrf.mxu0
        %697 = vmatprep.mubr.f32.mxu0 0.0
        %698 = vmatmul.mubr.f32.gmra.mxu0 %v402
        %v699 = vpop.f32.mrf.mxu0
        %v700 = vadd.f32 %v338, %v699
        %v701 = vpop.f32.mrf.mxu0
        %702 = vmatprep.mubr.f32.mxu0 0.0
        %703 = vmatmul.mubr.f32.gmra.mxu0 %v405
        %v704 = vpop.f32.mrf.mxu0
        %v705 = vadd.f32 %v338, %v704
        %v706 = vpop.f32.mrf.mxu0
        %707 = vmatprep.mubr.f32.mxu0 0.0
        %708 = vmatmul.mubr.f32.gmra.mxu0 %v408
        %v709 = vpop.f32.mrf.mxu0
        %v710 = vadd.f32 %v338, %v709
        %v711 = vpop.f32.mrf.mxu0
        %712 = vmatprep.mubr.f32.mxu0 0.0
        %713 = vmatmul.mubr.f32.gmra.mxu0 %v411
        %v714 = vpop.f32.mrf.mxu0
        %v715 = vadd.f32 %v338, %v714
        %v716 = vpop.f32.mrf.mxu0
        %717 = vmatprep.mubr.f32.mxu0 0.0
        %718 = vmatmul.mubr.f32.gmra.mxu0 %v414
        %v719 = vpop.f32.mrf.mxu0
        %v720 = vadd.f32 %v338, %v719
        %v721 = vpop.f32.mrf.mxu0
        %722 = vmatprep.mubr.f32.mxu0 0.0
        %723 = vmatmul.mubr.f32.gmra.mxu0 %v417
        %v724 = vpop.f32.mrf.mxu0
        %v725 = vadd.f32 %v338, %v724
        %v726 = vpop.f32.mrf.mxu0
        %727 = vmatprep.mubr.f32.mxu0 0.0
        %728 = vmatmul.mubr.f32.gmra.mxu0 %v420
        %v729 = vpop.f32.mrf.mxu0
        %v730 = vadd.f32 %v338, %v729
        %v731 = vpop.f32.mrf.mxu0
        %732 = vmatprep.mubr.f32.mxu0 0.0
        %733 = vmatmul.mubr.f32.gmra.mxu0 %v423
        %v734 = vpop.f32.mrf.mxu0
        %v735 = vadd.f32 %v338, %v734
        %v736 = vpop.f32.mrf.mxu0
        %737 = vmatprep.mubr.f32.mxu0 0.0
        %738 = vmatmul.mubr.f32.gmra.mxu0 %v426
        %v739 = vpop.f32.mrf.mxu0
        %v740 = vadd.f32 %v338, %v739
        %v741 = vpop.f32.mrf.mxu0
        %742 = vmatprep.mubr.f32.mxu0 0.0
        %743 = vmatmul.mubr.f32.gmra.mxu0 %v429
        %v744 = vpop.f32.mrf.mxu0
        %v745 = vadd.f32 %v338, %v744
        %v746 = vpop.f32.mrf.mxu0
        %747 = vmatprep.mubr.f32.mxu0 0.0
        %748 = vmatmul.mubr.f32.gmra.mxu0 %v432
        %v749 = vpop.f32.mrf.mxu0
        %v750 = vadd.f32 %v338, %v749
        %v751 = vpop.f32.mrf.mxu0
        %752 = vmatprep.mubr.f32.mxu0 0.0
        %753 = vmatmul.mubr.f32.gmra.mxu0 %v435
        %v754 = vpop.f32.mrf.mxu0
        %v755 = vadd.f32 %v338, %v754
        %v756 = vpop.f32.mrf.mxu0
        %757 = vmatprep.mubr.f32.mxu0 0.0
        %758 = vmatmul.mubr.f32.gmra.mxu0 %v438
        %v759 = vpop.f32.mrf.mxu0
        %v760 = vadd.f32 %v338, %v759
        %v761 = vpop.f32.mrf.mxu0
        %762 = vmatprep.mubr.f32.mxu0 0.0
        %763 = vmatmul.mubr.f32.gmra.mxu0 %v441
        %v764 = vpop.f32.mrf.mxu0
        %v765 = vadd.f32 %v338, %v764
        %v766 = vpop.f32.mrf.mxu0
        %767 = vmatprep.mubr.f32.mxu0 0.0
        %768 = vmatmul.mubr.f32.gmra.mxu0 %v444
        %v769 = vpop.f32.mrf.mxu0
        %v770 = vadd.f32 %v338, %v769
        %v771 = vpop.f32.mrf.mxu0
        %772 = vmatprep.mubr.f32.mxu0 0.0
        %773 = vmatmul.mubr.f32.gmra.mxu0 %v447
        %v774 = vpop.f32.mrf.mxu0
        %v775 = vadd.f32 %v338, %v774
        %v776 = vpop.f32.mrf.mxu0
        %777 = vmatprep.mubr.f32.mxu0 0.0
        %778 = vmatmul.mubr.f32.gmra.mxu0 %v450
        %v779 = vpop.f32.mrf.mxu0
        %v780 = vadd.f32 %v338, %v779
        %v781 = vpop.f32.mrf.mxu0
        %782 = vmatprep.mubr.f32.mxu0 0.0
        %783 = vmatmul.mubr.f32.gmra.mxu0 %v453
        %v784 = vpop.f32.mrf.mxu0
        %v785 = vadd.f32 %v338, %v784
        %v786 = vpop.f32.mrf.mxu0
        %787 = vmatprep.mubr.f32.mxu0 0.0
        %788 = vmatmul.mubr.f32.gmra.mxu0 %v456
        %v789 = vpop.f32.mrf.mxu0
        %v790 = vadd.f32 %v338, %v789
        %v791 = vpop.f32.mrf.mxu0
        %792 = vmatprep.mubr.f32.mxu0 0.0
        %793 = vmatmul.mubr.f32.gmra.mxu0 %v459
        %v794 = vpop.f32.mrf.mxu0
        %v795 = vadd.f32 %v338, %v794
        %v796 = vpop.f32.mrf.mxu0
        %797 = vmatprep.mubr.f32.mxu0 0.0
        %798 = vmatmul.mubr.f32.gmra.mxu0 %v462
        %v799 = vpop.f32.mrf.mxu0
        %v800 = vadd.f32 %v338, %v799
        %v801 = vpop.f32.mrf.mxu0
        %802 = vmatprep.mubr.f32.mxu0 0.0
        %803 = vmatmul.mubr.f32.gmra.mxu0 %v465
        %v804 = vpop.f32.mrf.mxu0
        %v805 = vadd.f32 %v338, %v804
        %v806 = vpop.f32.mrf.mxu0
        %807 = vmatprep.mubr.f32.mxu0 0.0
        %808 = vmatmul.mubr.f32.gmra.mxu0 %v468
        %v809 = vpop.f32.mrf.mxu0
        %v810 = vadd.f32 %v338, %v809
        %v811 = vpop.f32.mrf.mxu0
        %812 = vmatprep.mubr.f32.mxu0 0.0
        %813 = vmatmul.mubr.f32.gmra.mxu0 %v471
        %v814 = vpop.f32.mrf.mxu0
        %v815 = vadd.f32 %v338, %v814
        %v816 = vpop.f32.mrf.mxu0
        %817 = vmatprep.mubr.f32.mxu0 0.0
        %818 = vmatmul.mubr.f32.gmra.mxu0 %v474
        %v819 = vpop.f32.mrf.mxu0
        %v820 = vadd.f32 %v338, %v819
        %v821 = vpop.f32.mrf.mxu0
        %822 = vmatprep.mubr.f32.mxu0 0.0
        %823 = vmatmul.mubr.f32.gmra.mxu0 %v477
        %v824 = vpop.f32.mrf.mxu0
        %v825 = vadd.f32 %v338, %v824
        %v826 = vpop.f32.mrf.mxu0
        %827 = vmatprep.mubr.f32.mxu0 0.0
        %828 = vmatmul.mubr.f32.gmra.mxu0 %v480
        %v829 = vpop.f32.mrf.mxu0
        %v830 = vadd.f32 %v338, %v829
        %v831 = vpop.f32.mrf.mxu0
        %832 = vmatprep.mubr.f32.mxu0 0.0
        %833 = vmatmul.mubr.f32.gmra.mxu0 %v483
        %v834 = vpop.f32.mrf.mxu0
        %v835 = vadd.f32 %v338, %v834
        %v836 = vpop.f32.mrf.mxu0
        %837 = vmatprep.mubr.f32.mxu0 0.0
        %838 = vmatmul.mubr.f32.gmra.mxu0 %v486
        %v839 = vpop.f32.mrf.mxu0
        %v840 = vadd.f32 %v338, %v839
        %v841 = vpop.f32.mrf.mxu0
        %842 = vmatprep.mubr.f32.mxu0 0.0
        %843 = vmatmul.mubr.f32.gmra.mxu0 %v489
        %v844 = vpop.f32.mrf.mxu0
        %v845 = vadd.f32 %v338, %v844
        %v846 = vpop.f32.mrf.mxu0
        %847 = vmatprep.mubr.f32.mxu0 0.0
        %848 = vmatmul.mubr.f32.gmra.mxu0 %v492
        %v849 = vpop.f32.mrf.mxu0
        %v850 = vadd.f32 %v338, %v849
        %v851 = vpop.f32.mrf.mxu0
        %852 = vmatprep.mubr.f32.mxu0 0.0
        %853 = vmatmul.mubr.f32.gmra.mxu0 %v495
        %v854 = vpop.f32.mrf.mxu0
        %v855 = vadd.f32 %v338, %v854
        %v856 = vpop.f32.mrf.mxu0
        %857 = vmatprep.mubr.f32.mxu0 0.0
        %858 = vmatmul.mubr.f32.gmra.mxu0 %v498
        %v859 = vpop.f32.mrf.mxu0
        %v860 = vadd.f32 %v338, %v859
        %v861 = vpop.f32.mrf.mxu0
        %862 = vmatprep.mubr.f32.mxu0 0.0
        %863 = vmatmul.mubr.f32.gmra.mxu0 %v501
        %v864 = vpop.f32.mrf.mxu0
        %v865 = vadd.f32 %v338, %v864
        %v866 = vpop.f32.mrf.mxu0
        %867 = vmatprep.mubr.f32.mxu0 0.0
        %868 = vmatmul.mubr.f32.gmra.mxu0 %v504
        %v869 = vpop.f32.mrf.mxu0
        %v870 = vadd.f32 %v338, %v869
        %v871 = vpop.f32.mrf.mxu0
        %872 = vmatprep.mubr.f32.mxu0 0.0
        %873 = vmatmul.mubr.f32.gmra.mxu0 %v507
        %v874 = vpop.f32.mrf.mxu0
        %v875 = vadd.f32 %v338, %v874
        %v876 = vpop.f32.mrf.mxu0
        %877 = vmatprep.mubr.f32.mxu0 0.0
        %878 = vmatmul.mubr.f32.gmra.mxu0 %v510
        %v879 = vpop.f32.mrf.mxu0
        %v880 = vadd.f32 %v338, %v879
        %v881 = vpop.f32.mrf.mxu0
        %882 = vmatprep.mubr.f32.mxu0 0.0
        %883 = vmatmul.mubr.f32.gmra.mxu0 %v513
        %v884 = vpop.f32.mrf.mxu0
        %v885 = vadd.f32 %v338, %v884
        %v886 = vpop.f32.mrf.mxu0
        %887 = vmatprep.mubr.f32.mxu0 0.0
        %888 = vmatmul.mubr.f32.gmra.mxu0 %v516
        %v889 = vpop.f32.mrf.mxu0
        %v890 = vadd.f32 %v338, %v889
        %v891 = vpop.f32.mrf.mxu0
        %892 = vmatprep.mubr.f32.mxu0 0.0
        %893 = vmatmul.mubr.f32.gmra.mxu0 %v519
        %v894 = vpop.f32.mrf.mxu0
        %v895 = vadd.f32 %v338, %v894
        %v896 = vpop.f32.mrf.mxu0
        %897 = vmatprep.mubr.f32.mxu0 0.0
        %898 = vmatmul.mubr.f32.gmra.mxu0 %v522
        %v899 = vpop.f32.mrf.mxu0
        %v900 = vadd.f32 %v338, %v899
        %v901 = vpop.f32.mrf.mxu0
        %902 = vmatprep.mubr.f32.mxu0 0.0
        %903 = vmatmul.mubr.f32.gmra.mxu0 %v525
        %v904 = vpop.f32.mrf.mxu0
        %v905 = vadd.f32 %v338, %v904
        %v906 = vpop.f32.mrf.mxu0
        %907 = vmatprep.mubr.f32.mxu0 0.0
        %908 = vmatmul.mubr.f32.gmra.mxu0 %v528
        %v909 = vpop.f32.mrf.mxu0
        %v910 = vadd.f32 %v338, %v909
        %v911 = vpop.f32.mrf.mxu0
        %912 = vmatprep.mubr.f32.mxu0 0.0
        %913 = vmatmul.mubr.f32.gmra.mxu0 %v531
        %v914 = vpop.f32.mrf.mxu0
        %v915 = vadd.f32 %v338, %v914
        %v916 = vpop.f32.mrf.mxu0
        %917 = vdwg.mxu0
        %vm918 = vcmask 261120
        %919 = vst.msk [vmem:[%s265] sm:$0xff] %vm918, %v600
        %920 = vst.msk [vmem:[%s265 + $0x8] sm:$0xff] %vm918, %v605
        %921 = vst.msk [vmem:[%s265 + $0x10] sm:$0xff] %vm918, %v610
        %922 = vst.msk [vmem:[%s265 + $0x18] sm:$0xff] %vm918, %v615
        %923 = vst.msk [vmem:[%s265 + $0x20] sm:$0xff] %vm918, %v620
        %924 = vst.msk [vmem:[%s265 + $0x28] sm:$0xff] %vm918, %v625
        %925 = vst.msk [vmem:[%s265 + $0x30] sm:$0xff] %vm918, %v630
        %926 = vst.msk [vmem:[%s265 + $0x38] sm:$0xff] %vm918, %v635
        %927 = vst.msk [vmem:[%s265 + $0x40] sm:$0xff] %vm918, %v640
        %928 = vst.msk [vmem:[%s265 + $0x48] sm:$0xff] %vm918, %v645
        %929 = vst.msk [vmem:[%s265 + $0x50] sm:$0xff] %vm918, %v650
        %930 = vst.msk [vmem:[%s265 + $0x58] sm:$0xff] %vm918, %v655
        %931 = vst.msk [vmem:[%s265 + $0x60] sm:$0xff] %vm918, %v660
        %932 = vst.msk [vmem:[%s265 + $0x68] sm:$0xff] %vm918, %v665
        %933 = vst.msk [vmem:[%s265 + $0x70] sm:$0xff] %vm918, %v670
        %934 = vst.msk [vmem:[%s265 + $0x78] sm:$0xff] %vm918, %v675
        %935 = vst.msk [vmem:[%s265 + $0x80] sm:$0xff] %vm918, %v680
        %936 = vst.msk [vmem:[%s265 + $0x88] sm:$0xff] %vm918, %v685
        %937 = vst.msk [vmem:[%s265 + $0x90] sm:$0xff] %vm918, %v690
        %938 = vst.msk [vmem:[%s265 + $0x98] sm:$0xff] %vm918, %v695
        %939 = vst.msk [vmem:[%s265 + $0xa0] sm:$0xff] %vm918, %v700
        %940 = vst.msk [vmem:[%s265 + $0xa8] sm:$0xff] %vm918, %v705
        %941 = vst.msk [vmem:[%s265 + $0xb0] sm:$0xff] %vm918, %v710
        %942 = vst.msk [vmem:[%s265 + $0xb8] sm:$0xff] %vm918, %v715
        %943 = vst.msk [vmem:[%s265 + $0xc0] sm:$0xff] %vm918, %v720
        %944 = vst.msk [vmem:[%s265 + $0xc8] sm:$0xff] %vm918, %v725
        %945 = vst.msk [vmem:[%s265 + $0xd0] sm:$0xff] %vm918, %v730
        %946 = vst.msk [vmem:[%s265 + $0xd8] sm:$0xff] %vm918, %v735
        %947 = vst.msk [vmem:[%s265 + $0xe0] sm:$0xff] %vm918, %v740
        %948 = vst.msk [vmem:[%s265 + $0xe8] sm:$0xff] %vm918, %v745
        %949 = vst.msk [vmem:[%s265 + $0xf0] sm:$0xff] %vm918, %v750
        %950 = vst.msk [vmem:[%s265 + $0xf8] sm:$0xff] %vm918, %v755
        %951 = vst.msk [vmem:[%s265 + $0x100] sm:$0xff] %vm918, %v760
        %952 = vst.msk [vmem:[%s265 + $0x108] sm:$0xff] %vm918, %v765
        %953 = vst.msk [vmem:[%s265 + $0x110] sm:$0xff] %vm918, %v770
        %954 = vst.msk [vmem:[%s265 + $0x118] sm:$0xff] %vm918, %v775
        %955 = vst.msk [vmem:[%s265 + $0x120] sm:$0xff] %vm918, %v780
        %956 = vst.msk [vmem:[%s265 + $0x128] sm:$0xff] %vm918, %v785
        %957 = vst.msk [vmem:[%s265 + $0x130] sm:$0xff] %vm918, %v790
        %958 = vst.msk [vmem:[%s265 + $0x138] sm:$0xff] %vm918, %v795
        %959 = vst.msk [vmem:[%s265 + $0x140] sm:$0xff] %vm918, %v800
        %960 = vst.msk [vmem:[%s265 + $0x148] sm:$0xff] %vm918, %v805
        %961 = vst.msk [vmem:[%s265 + $0x150] sm:$0xff] %vm918, %v810
        %962 = vst.msk [vmem:[%s265 + $0x158] sm:$0xff] %vm918, %v815
        %963 = vst.msk [vmem:[%s265 + $0x160] sm:$0xff] %vm918, %v820
        %964 = vst.msk [vmem:[%s265 + $0x168] sm:$0xff] %vm918, %v825
        %965 = vst.msk [vmem:[%s265 + $0x170] sm:$0xff] %vm918, %v830
        %966 = vst.msk [vmem:[%s265 + $0x178] sm:$0xff] %vm918, %v835
        %967 = vst.msk [vmem:[%s265 + $0x180] sm:$0xff] %vm918, %v840
        %968 = vst.msk [vmem:[%s265 + $0x188] sm:$0xff] %vm918, %v845
        %969 = vst.msk [vmem:[%s265 + $0x190] sm:$0xff] %vm918, %v850
        %970 = vst.msk [vmem:[%s265 + $0x198] sm:$0xff] %vm918, %v855
        %971 = vst.msk [vmem:[%s265 + $0x1a0] sm:$0xff] %vm918, %v860
        %972 = vst.msk [vmem:[%s265 + $0x1a8] sm:$0xff] %vm918, %v865
        %973 = vst.msk [vmem:[%s265 + $0x1b0] sm:$0xff] %vm918, %v870
        %974 = vst.msk [vmem:[%s265 + $0x1b8] sm:$0xff] %vm918, %v875
        %975 = vst.msk [vmem:[%s265 + $0x1c0] sm:$0xff] %vm918, %v880
        %976 = vst.msk [vmem:[%s265 + $0x1c8] sm:$0xff] %vm918, %v885
        %977 = vst.msk [vmem:[%s265 + $0x1d0] sm:$0xff] %vm918, %v890
        %978 = vst.msk [vmem:[%s265 + $0x1d8] sm:$0xff] %vm918, %v895
        %979 = vst.msk [vmem:[%s265 + $0x1e0] sm:$0xff] %vm918, %v900
        %980 = vst.msk [vmem:[%s265 + $0x1e8] sm:$0xff] %vm918, %v905
        %981 = vst.msk [vmem:[%s265 + $0x1f0] sm:$0xff] %vm918, %v910
        %982 = vst.msk [vmem:[%s265 + $0x1f8] sm:$0xff] %vm918, %v915
        %v983 = vld [vmem:[%s3] sm:$0x1]
        %v985 = vlaneseq
        %v986 = vshrl.u32 %v985, 7
        %v987 = vsub.s32 0, %v986
        %v988 = vrot.slane %v983, %v987
        %v990 = vmul.f32 %v600, %v988
        %v991 = vmul.f32 %v605, %v988
        %v992 = vmul.f32 %v610, %v988
        %v993 = vmul.f32 %v615, %v988
        %v994 = vmul.f32 %v620, %v988
        %v995 = vmul.f32 %v625, %v988
        %v996 = vmul.f32 %v630, %v988
        %v997 = vmul.f32 %v635, %v988
        %v998 = vmul.f32 %v640, %v988
        %v999 = vmul.f32 %v645, %v988
        %v1000 = vmul.f32 %v650, %v988
        %v1001 = vmul.f32 %v655, %v988
        %v1002 = vmul.f32 %v660, %v988
        %v1003 = vmul.f32 %v665, %v988
        %v1004 = vmul.f32 %v670, %v988
        %v1005 = vmul.f32 %v675, %v988
        %v1006 = vmul.f32 %v680, %v988
        %v1007 = vmul.f32 %v685, %v988
        %v1008 = vmul.f32 %v690, %v988
        %v1009 = vmul.f32 %v695, %v988
        %v1010 = vmul.f32 %v700, %v988
        %v1011 = vmul.f32 %v705, %v988
        %v1012 = vmul.f32 %v710, %v988
        %v1013 = vmul.f32 %v715, %v988
        %v1014 = vmul.f32 %v720, %v988
        %v1015 = vmul.f32 %v725, %v988
        %v1016 = vmul.f32 %v730, %v988
        %v1017 = vmul.f32 %v735, %v988
        %v1018 = vmul.f32 %v740, %v988
        %v1019 = vmul.f32 %v745, %v988
        %v1020 = vmul.f32 %v750, %v988
        %v1021 = vmul.f32 %v755, %v988
        %v1022 = vmul.f32 %v760, %v988
        %v1023 = vmul.f32 %v765, %v988
        %v1024 = vmul.f32 %v770, %v988
        %v1025 = vmul.f32 %v775, %v988
        %v1026 = vmul.f32 %v780, %v988
        %v1027 = vmul.f32 %v785, %v988
        %v1028 = vmul.f32 %v790, %v988
        %v1029 = vmul.f32 %v795, %v988
        %v1030 = vmul.f32 %v800, %v988
        %v1031 = vmul.f32 %v805, %v988
        %v1032 = vmul.f32 %v810, %v988
        %v1033 = vmul.f32 %v815, %v988
        %v1034 = vmul.f32 %v820, %v988
        %v1035 = vmul.f32 %v825, %v988
        %v1036 = vmul.f32 %v830, %v988
        %v1037 = vmul.f32 %v835, %v988
        %v1038 = vmul.f32 %v840, %v988
        %v1039 = vmul.f32 %v845, %v988
        %v1040 = vmul.f32 %v850, %v988
        %v1041 = vmul.f32 %v855, %v988
        %v1042 = vmul.f32 %v860, %v988
        %v1043 = vmul.f32 %v865, %v988
        %v1044 = vmul.f32 %v870, %v988
        %v1045 = vmul.f32 %v875, %v988
        %v1046 = vmul.f32 %v880, %v988
        %v1047 = vmul.f32 %v885, %v988
        %v1048 = vmul.f32 %v890, %v988
        %v1049 = vmul.f32 %v895, %v988
        %v1050 = vmul.f32 %v900, %v988
        %v1051 = vmul.f32 %v905, %v988
        %v1052 = vmul.f32 %v910, %v988
        %v1053 = vmul.f32 %v915, %v988
        %v1054 = vsel %vm918, %v990, 0.0
        %1055 = vadd.xlane.f32.xlu0 %v1054
        %v1056 = vpop.xlane.xlu0 %1055
        %v1057 = vsel %vm918, %v991, 0.0
        %1058 = vadd.xlane.f32.xlu0 %v1057
        %v1059 = vpop.xlane.xlu0 %1058
        %v1060 = vsel %vm918, %v992, 0.0
        %1061 = vadd.xlane.f32.xlu0 %v1060
        %v1062 = vpop.xlane.xlu0 %1061
        %v1063 = vsel %vm918, %v993, 0.0
        %1064 = vadd.xlane.f32.xlu0 %v1063
        %v1065 = vpop.xlane.xlu0 %1064
        %v1066 = vsel %vm918, %v994, 0.0
        %1067 = vadd.xlane.f32.xlu0 %v1066
        %v1068 = vpop.xlane.xlu0 %1067
        %v1069 = vsel %vm918, %v995, 0.0
        %1070 = vadd.xlane.f32.xlu0 %v1069
        %v1071 = vpop.xlane.xlu0 %1070
        %v1072 = vsel %vm918, %v996, 0.0
        %1073 = vadd.xlane.f32.xlu0 %v1072
        %v1074 = vpop.xlane.xlu0 %1073
        %v1075 = vsel %vm918, %v997, 0.0
        %1076 = vadd.xlane.f32.xlu0 %v1075
        %v1077 = vpop.xlane.xlu0 %1076
        %v1078 = vsel %vm918, %v998, 0.0
        %1079 = vadd.xlane.f32.xlu0 %v1078
        %v1080 = vpop.xlane.xlu0 %1079
        %v1081 = vsel %vm918, %v999, 0.0
        %1082 = vadd.xlane.f32.xlu0 %v1081
        %v1083 = vpop.xlane.xlu0 %1082
        %v1084 = vsel %vm918, %v1000, 0.0
        %1085 = vadd.xlane.f32.xlu0 %v1084
        %v1086 = vpop.xlane.xlu0 %1085
        %v1087 = vsel %vm918, %v1001, 0.0
        %1088 = vadd.xlane.f32.xlu0 %v1087
        %v1089 = vpop.xlane.xlu0 %1088
        %v1090 = vsel %vm918, %v1002, 0.0
        %1091 = vadd.xlane.f32.xlu0 %v1090
        %v1092 = vpop.xlane.xlu0 %1091
        %v1093 = vsel %vm918, %v1003, 0.0
        %1094 = vadd.xlane.f32.xlu0 %v1093
        %v1095 = vpop.xlane.xlu0 %1094
        %v1096 = vsel %vm918, %v1004, 0.0
        %1097 = vadd.xlane.f32.xlu0 %v1096
        %v1098 = vpop.xlane.xlu0 %1097
        %v1099 = vsel %vm918, %v1005, 0.0
        %1100 = vadd.xlane.f32.xlu0 %v1099
        %v1101 = vpop.xlane.xlu0 %1100
        %v1102 = vsel %vm918, %v1006, 0.0
        %1103 = vadd.xlane.f32.xlu0 %v1102
        %v1104 = vpop.xlane.xlu0 %1103
        %v1105 = vsel %vm918, %v1007, 0.0
        %1106 = vadd.xlane.f32.xlu0 %v1105
        %v1107 = vpop.xlane.xlu0 %1106
        %v1108 = vsel %vm918, %v1008, 0.0
        %1109 = vadd.xlane.f32.xlu0 %v1108
        %v1110 = vpop.xlane.xlu0 %1109
        %v1111 = vsel %vm918, %v1009, 0.0
        %1112 = vadd.xlane.f32.xlu0 %v1111
        %v1113 = vpop.xlane.xlu0 %1112
        %v1114 = vsel %vm918, %v1010, 0.0
        %1115 = vadd.xlane.f32.xlu0 %v1114
        %v1116 = vpop.xlane.xlu0 %1115
        %v1117 = vsel %vm918, %v1011, 0.0
        %1118 = vadd.xlane.f32.xlu0 %v1117
        %v1119 = vpop.xlane.xlu0 %1118
        %v1120 = vsel %vm918, %v1012, 0.0
        %1121 = vadd.xlane.f32.xlu0 %v1120
        %v1122 = vpop.xlane.xlu0 %1121
        %v1123 = vsel %vm918, %v1013, 0.0
        %1124 = vadd.xlane.f32.xlu0 %v1123
        %v1125 = vpop.xlane.xlu0 %1124
        %v1126 = vsel %vm918, %v1014, 0.0
        %1127 = vadd.xlane.f32.xlu0 %v1126
        %v1128 = vpop.xlane.xlu0 %1127
        %v1129 = vsel %vm918, %v1015, 0.0
        %1130 = vadd.xlane.f32.xlu0 %v1129
        %v1131 = vpop.xlane.xlu0 %1130
        %v1132 = vsel %vm918, %v1016, 0.0
        %1133 = vadd.xlane.f32.xlu0 %v1132
        %v1134 = vpop.xlane.xlu0 %1133
        %v1135 = vsel %vm918, %v1017, 0.0
        %1136 = vadd.xlane.f32.xlu0 %v1135
        %v1137 = vpop.xlane.xlu0 %1136
        %v1138 = vsel %vm918, %v1018, 0.0
        %1139 = vadd.xlane.f32.xlu0 %v1138
        %v1140 = vpop.xlane.xlu0 %1139
        %v1141 = vsel %vm918, %v1019, 0.0
        %1142 = vadd.xlane.f32.xlu0 %v1141
        %v1143 = vpop.xlane.xlu0 %1142
        %v1144 = vsel %vm918, %v1020, 0.0
        %1145 = vadd.xlane.f32.xlu0 %v1144
        %v1146 = vpop.xlane.xlu0 %1145
        %v1147 = vsel %vm918, %v1021, 0.0
        %1148 = vadd.xlane.f32.xlu0 %v1147
        %v1149 = vpop.xlane.xlu0 %1148
        %v1150 = vsel %vm918, %v1022, 0.0
        %1151 = vadd.xlane.f32.xlu0 %v1150
        %v1152 = vpop.xlane.xlu0 %1151
        %v1153 = vsel %vm918, %v1023, 0.0
        %1154 = vadd.xlane.f32.xlu0 %v1153
        %v1155 = vpop.xlane.xlu0 %1154
        %v1156 = vsel %vm918, %v1024, 0.0
        %1157 = vadd.xlane.f32.xlu0 %v1156
        %v1158 = vpop.xlane.xlu0 %1157
        %v1159 = vsel %vm918, %v1025, 0.0
        %1160 = vadd.xlane.f32.xlu0 %v1159
        %v1161 = vpop.xlane.xlu0 %1160
        %v1162 = vsel %vm918, %v1026, 0.0
        %1163 = vadd.xlane.f32.xlu0 %v1162
        %v1164 = vpop.xlane.xlu0 %1163
        %v1165 = vsel %vm918, %v1027, 0.0
        %1166 = vadd.xlane.f32.xlu0 %v1165
        %v1167 = vpop.xlane.xlu0 %1166
        %v1168 = vsel %vm918, %v1028, 0.0
        %1169 = vadd.xlane.f32.xlu0 %v1168
        %v1170 = vpop.xlane.xlu0 %1169
        %v1171 = vsel %vm918, %v1029, 0.0
        %1172 = vadd.xlane.f32.xlu0 %v1171
        %v1173 = vpop.xlane.xlu0 %1172
        %v1174 = vsel %vm918, %v1030, 0.0
        %1175 = vadd.xlane.f32.xlu0 %v1174
        %v1176 = vpop.xlane.xlu0 %1175
        %v1177 = vsel %vm918, %v1031, 0.0
        %1178 = vadd.xlane.f32.xlu0 %v1177
        %v1179 = vpop.xlane.xlu0 %1178
        %v1180 = vsel %vm918, %v1032, 0.0
        %1181 = vadd.xlane.f32.xlu0 %v1180
        %v1182 = vpop.xlane.xlu0 %1181
        %v1183 = vsel %vm918, %v1033, 0.0
        %1184 = vadd.xlane.f32.xlu0 %v1183
        %v1185 = vpop.xlane.xlu0 %1184
        %v1186 = vsel %vm918, %v1034, 0.0
        %1187 = vadd.xlane.f32.xlu0 %v1186
        %v1188 = vpop.xlane.xlu0 %1187
        %v1189 = vsel %vm918, %v1035, 0.0
        %1190 = vadd.xlane.f32.xlu0 %v1189
        %v1191 = vpop.xlane.xlu0 %1190
        %v1192 = vsel %vm918, %v1036, 0.0
        %1193 = vadd.xlane.f32.xlu0 %v1192
        %v1194 = vpop.xlane.xlu0 %1193
        %v1195 = vsel %vm918, %v1037, 0.0
        %1196 = vadd.xlane.f32.xlu0 %v1195
        %v1197 = vpop.xlane.xlu0 %1196
        %v1198 = vsel %vm918, %v1038, 0.0
        %1199 = vadd.xlane.f32.xlu0 %v1198
        %v1200 = vpop.xlane.xlu0 %1199
        %v1201 = vsel %vm918, %v1039, 0.0
        %1202 = vadd.xlane.f32.xlu0 %v1201
        %v1203 = vpop.xlane.xlu0 %1202
        %v1204 = vsel %vm918, %v1040, 0.0
        %1205 = vadd.xlane.f32.xlu0 %v1204
        %v1206 = vpop.xlane.xlu0 %1205
        %v1207 = vsel %vm918, %v1041, 0.0
        %1208 = vadd.xlane.f32.xlu0 %v1207
        %v1209 = vpop.xlane.xlu0 %1208
        %v1210 = vsel %vm918, %v1042, 0.0
        %1211 = vadd.xlane.f32.xlu0 %v1210
        %v1212 = vpop.xlane.xlu0 %1211
        %v1213 = vsel %vm918, %v1043, 0.0
        %1214 = vadd.xlane.f32.xlu0 %v1213
        %v1215 = vpop.xlane.xlu0 %1214
        %v1216 = vsel %vm918, %v1044, 0.0
        %1217 = vadd.xlane.f32.xlu0 %v1216
        %v1218 = vpop.xlane.xlu0 %1217
        %v1219 = vsel %vm918, %v1045, 0.0
        %1220 = vadd.xlane.f32.xlu0 %v1219
        %v1221 = vpop.xlane.xlu0 %1220
        %v1222 = vsel %vm918, %v1046, 0.0
        %1223 = vadd.xlane.f32.xlu0 %v1222
        %v1224 = vpop.xlane.xlu0 %1223
        %v1225 = vsel %vm918, %v1047, 0.0
        %1226 = vadd.xlane.f32.xlu0 %v1225
        %v1227 = vpop.xlane.xlu0 %1226
        %v1228 = vsel %vm918, %v1048, 0.0
        %1229 = vadd.xlane.f32.xlu0 %v1228
        %v1230 = vpop.xlane.xlu0 %1229
        %v1231 = vsel %vm918, %v1049, 0.0
        %1232 = vadd.xlane.f32.xlu0 %v1231
        %v1233 = vpop.xlane.xlu0 %1232
        %v1234 = vsel %vm918, %v1050, 0.0
        %1235 = vadd.xlane.f32.xlu0 %v1234
        %v1236 = vpop.xlane.xlu0 %1235
        %v1237 = vsel %vm918, %v1051, 0.0
        %1238 = vadd.xlane.f32.xlu0 %v1237
        %v1239 = vpop.xlane.xlu0 %1238
        %v1240 = vsel %vm918, %v1052, 0.0
        %1241 = vadd.xlane.f32.xlu0 %v1240
        %v1242 = vpop.xlane.xlu0 %1241
        %v1243 = vsel %vm918, %v1053, 0.0
        %1244 = vadd.xlane.f32.xlu0 %v1243
        %v1245 = vpop.xlane.xlu0 %1244
        %s1246 = sld [smem:[#allocation2]]
        %v1247 = vstv %s1246
        %v1248 = vadd.f32 %v1056, %v1247
        %v1249 = vadd.f32 %v1059, %v1247
        %v1250 = vadd.f32 %v1062, %v1247
        %v1251 = vadd.f32 %v1065, %v1247
        %v1252 = vadd.f32 %v1068, %v1247
        %v1253 = vadd.f32 %v1071, %v1247
        %v1254 = vadd.f32 %v1074, %v1247
        %v1255 = vadd.f32 %v1077, %v1247
        %v1256 = vadd.f32 %v1080, %v1247
        %v1257 = vadd.f32 %v1083, %v1247
        %v1258 = vadd.f32 %v1086, %v1247
        %v1259 = vadd.f32 %v1089, %v1247
        %v1260 = vadd.f32 %v1092, %v1247
        %v1261 = vadd.f32 %v1095, %v1247
        %v1262 = vadd.f32 %v1098, %v1247
        %v1263 = vadd.f32 %v1101, %v1247
        %v1264 = vadd.f32 %v1104, %v1247
        %v1265 = vadd.f32 %v1107, %v1247
        %v1266 = vadd.f32 %v1110, %v1247
        %v1267 = vadd.f32 %v1113, %v1247
        %v1268 = vadd.f32 %v1116, %v1247
        %v1269 = vadd.f32 %v1119, %v1247
        %v1270 = vadd.f32 %v1122, %v1247
        %v1271 = vadd.f32 %v1125, %v1247
        %v1272 = vadd.f32 %v1128, %v1247
        %v1273 = vadd.f32 %v1131, %v1247
        %v1274 = vadd.f32 %v1134, %v1247
        %v1275 = vadd.f32 %v1137, %v1247
        %v1276 = vadd.f32 %v1140, %v1247
        %v1277 = vadd.f32 %v1143, %v1247
        %v1278 = vadd.f32 %v1146, %v1247
        %v1279 = vadd.f32 %v1149, %v1247
        %v1280 = vadd.f32 %v1152, %v1247
        %v1281 = vadd.f32 %v1155, %v1247
        %v1282 = vadd.f32 %v1158, %v1247
        %v1283 = vadd.f32 %v1161, %v1247
        %v1284 = vadd.f32 %v1164, %v1247
        %v1285 = vadd.f32 %v1167, %v1247
        %v1286 = vadd.f32 %v1170, %v1247
        %v1287 = vadd.f32 %v1173, %v1247
        %v1288 = vadd.f32 %v1176, %v1247
        %v1289 = vadd.f32 %v1179, %v1247
        %v1290 = vadd.f32 %v1182, %v1247
        %v1291 = vadd.f32 %v1185, %v1247
        %v1292 = vadd.f32 %v1188, %v1247
        %v1293 = vadd.f32 %v1191, %v1247
        %v1294 = vadd.f32 %v1194, %v1247
        %v1295 = vadd.f32 %v1197, %v1247
        %v1296 = vadd.f32 %v1200, %v1247
        %v1297 = vadd.f32 %v1203, %v1247
        %v1298 = vadd.f32 %v1206, %v1247
        %v1299 = vadd.f32 %v1209, %v1247
        %v1300 = vadd.f32 %v1212, %v1247
        %v1301 = vadd.f32 %v1215, %v1247
        %v1302 = vadd.f32 %v1218, %v1247
        %v1303 = vadd.f32 %v1221, %v1247
        %v1304 = vadd.f32 %v1224, %v1247
        %v1305 = vadd.f32 %v1227, %v1247
        %v1306 = vadd.f32 %v1230, %v1247
        %v1307 = vadd.f32 %v1233, %v1247
        %v1308 = vadd.f32 %v1236, %v1247
        %v1309 = vadd.f32 %v1239, %v1247
        %v1310 = vadd.f32 %v1242, %v1247
        %v1311 = vadd.f32 %v1245, %v1247
        %v1312 = vxor.u32 %v1248, 2147483648
        %v1313 = vxor.u32 %v1249, 2147483648
        %v1314 = vxor.u32 %v1250, 2147483648
        %v1315 = vxor.u32 %v1251, 2147483648
        %v1316 = vxor.u32 %v1252, 2147483648
        %v1317 = vxor.u32 %v1253, 2147483648
        %v1318 = vxor.u32 %v1254, 2147483648
        %v1319 = vxor.u32 %v1255, 2147483648
        %v1320 = vxor.u32 %v1256, 2147483648
        %v1321 = vxor.u32 %v1257, 2147483648
        %v1322 = vxor.u32 %v1258, 2147483648
        %v1323 = vxor.u32 %v1259, 2147483648
        %v1324 = vxor.u32 %v1260, 2147483648
        %v1325 = vxor.u32 %v1261, 2147483648
        %v1326 = vxor.u32 %v1262, 2147483648
        %v1327 = vxor.u32 %v1263, 2147483648
        %v1328 = vxor.u32 %v1264, 2147483648
        %v1329 = vxor.u32 %v1265, 2147483648
        %v1330 = vxor.u32 %v1266, 2147483648
        %v1331 = vxor.u32 %v1267, 2147483648
        %v1332 = vxor.u32 %v1268, 2147483648
        %v1333 = vxor.u32 %v1269, 2147483648
        %v1334 = vxor.u32 %v1270, 2147483648
        %v1335 = vxor.u32 %v1271, 2147483648
        %v1336 = vxor.u32 %v1272, 2147483648
        %v1337 = vxor.u32 %v1273, 2147483648
        %v1338 = vxor.u32 %v1274, 2147483648
        %v1339 = vxor.u32 %v1275, 2147483648
        %v1340 = vxor.u32 %v1276, 2147483648
        %v1341 = vxor.u32 %v1277, 2147483648
        %v1342 = vxor.u32 %v1278, 2147483648
        %v1343 = vxor.u32 %v1279, 2147483648
        %v1344 = vxor.u32 %v1280, 2147483648
        %v1345 = vxor.u32 %v1281, 2147483648
        %v1346 = vxor.u32 %v1282, 2147483648
        %v1347 = vxor.u32 %v1283, 2147483648
        %v1348 = vxor.u32 %v1284, 2147483648
        %v1349 = vxor.u32 %v1285, 2147483648
        %v1350 = vxor.u32 %v1286, 2147483648
        %v1351 = vxor.u32 %v1287, 2147483648
        %v1352 = vxor.u32 %v1288, 2147483648
        %v1353 = vxor.u32 %v1289, 2147483648
        %v1354 = vxor.u32 %v1290, 2147483648
        %v1355 = vxor.u32 %v1291, 2147483648
        %v1356 = vxor.u32 %v1292, 2147483648
        %v1357 = vxor.u32 %v1293, 2147483648
        %v1358 = vxor.u32 %v1294, 2147483648
        %v1359 = vxor.u32 %v1295, 2147483648
        %v1360 = vxor.u32 %v1296, 2147483648
        %v1361 = vxor.u32 %v1297, 2147483648
        %v1362 = vxor.u32 %v1298, 2147483648
        %v1363 = vxor.u32 %v1299, 2147483648
        %v1364 = vxor.u32 %v1300, 2147483648
        %v1365 = vxor.u32 %v1301, 2147483648
        %v1366 = vxor.u32 %v1302, 2147483648
        %v1367 = vxor.u32 %v1303, 2147483648
        %v1368 = vxor.u32 %v1304, 2147483648
        %v1369 = vxor.u32 %v1305, 2147483648
        %v1370 = vxor.u32 %v1306, 2147483648
        %v1371 = vxor.u32 %v1307, 2147483648
        %v1372 = vxor.u32 %v1308, 2147483648
        %v1373 = vxor.u32 %v1309, 2147483648
        %v1374 = vxor.u32 %v1310, 2147483648
        %v1375 = vxor.u32 %v1311, 2147483648
        %v1376 = vmul.f32 %v1312, 1.442695
        %v1377 = vpow.pop %v1376
        %v1378 = vmul.f32 %v1313, 1.442695
        %v1379 = vpow.pop %v1378
        %v1380 = vmul.f32 %v1314, 1.442695
        %v1381 = vpow.pop %v1380
        %v1382 = vmul.f32 %v1315, 1.442695
        %v1383 = vpow.pop %v1382
        %v1384 = vmul.f32 %v1316, 1.442695
        %v1385 = vpow.pop %v1384
        %v1386 = vmul.f32 %v1317, 1.442695
        %v1387 = vpow.pop %v1386
        %v1388 = vmul.f32 %v1318, 1.442695
        %v1389 = vpow.pop %v1388
        %v1390 = vmul.f32 %v1319, 1.442695
        %v1391 = vpow.pop %v1390
        %v1392 = vmul.f32 %v1320, 1.442695
        %v1393 = vpow.pop %v1392
        %v1394 = vmul.f32 %v1321, 1.442695
        %v1395 = vpow.pop %v1394
        %v1396 = vmul.f32 %v1322, 1.442695
        %v1397 = vpow.pop %v1396
        %v1398 = vmul.f32 %v1323, 1.442695
        %v1399 = vpow.pop %v1398
        %v1400 = vmul.f32 %v1324, 1.442695
        %v1401 = vpow.pop %v1400
        %v1402 = vmul.f32 %v1325, 1.442695
        %v1403 = vpow.pop %v1402
        %v1404 = vmul.f32 %v1326, 1.442695
        %v1405 = vpow.pop %v1404
        %v1406 = vmul.f32 %v1327, 1.442695
        %v1407 = vpow.pop %v1406
        %v1408 = vmul.f32 %v1328, 1.442695
        %v1409 = vpow.pop %v1408
        %v1410 = vmul.f32 %v1329, 1.442695
        %v1411 = vpow.pop %v1410
        %v1412 = vmul.f32 %v1330, 1.442695
        %v1413 = vpow.pop %v1412
        %v1414 = vmul.f32 %v1331, 1.442695
        %v1415 = vpow.pop %v1414
        %v1416 = vmul.f32 %v1332, 1.442695
        %v1417 = vpow.pop %v1416
        %v1418 = vmul.f32 %v1333, 1.442695
        %v1419 = vpow.pop %v1418
        %v1420 = vmul.f32 %v1334, 1.442695
        %v1421 = vpow.pop %v1420
        %v1422 = vmul.f32 %v1335, 1.442695
        %v1423 = vpow.pop %v1422
        %v1424 = vmul.f32 %v1336, 1.442695
        %v1425 = vpow.pop %v1424
        %v1426 = vmul.f32 %v1337, 1.442695
        %v1427 = vpow.pop %v1426
        %v1428 = vmul.f32 %v1338, 1.442695
        %v1429 = vpow.pop %v1428
        %v1430 = vmul.f32 %v1339, 1.442695
        %v1431 = vpow.pop %v1430
        %v1432 = vmul.f32 %v1340, 1.442695
        %v1433 = vpow.pop %v1432
        %v1434 = vmul.f32 %v1341, 1.442695
        %v1435 = vpow.pop %v1434
        %v1436 = vmul.f32 %v1342, 1.442695
        %v1437 = vpow.pop %v1436
        %v1438 = vmul.f32 %v1343, 1.442695
        %v1439 = vpow.pop %v1438
        %v1440 = vmul.f32 %v1344, 1.442695
        %v1441 = vpow.pop %v1440
        %v1442 = vmul.f32 %v1345, 1.442695
        %v1443 = vpow.pop %v1442
        %v1444 = vmul.f32 %v1346, 1.442695
        %v1445 = vpow.pop %v1444
        %v1446 = vmul.f32 %v1347, 1.442695
        %v1447 = vpow.pop %v1446
        %v1448 = vmul.f32 %v1348, 1.442695
        %v1449 = vpow.pop %v1448
        %v1450 = vmul.f32 %v1349, 1.442695
        %v1451 = vpow.pop %v1450
        %v1452 = vmul.f32 %v1350, 1.442695
        %v1453 = vpow.pop %v1452
        %v1454 = vmul.f32 %v1351, 1.442695
        %v1455 = vpow.pop %v1454
        %v1456 = vmul.f32 %v1352, 1.442695
        %v1457 = vpow.pop %v1456
        %v1458 = vmul.f32 %v1353, 1.442695
        %v1459 = vpow.pop %v1458
        %v1460 = vmul.f32 %v1354, 1.442695
        %v1461 = vpow.pop %v1460
        %v1462 = vmul.f32 %v1355, 1.442695
        %v1463 = vpow.pop %v1462
        %v1464 = vmul.f32 %v1356, 1.442695
        %v1465 = vpow.pop %v1464
        %v1466 = vmul.f32 %v1357, 1.442695
        %v1467 = vpow.pop %v1466
        %v1468 = vmul.f32 %v1358, 1.442695
        %v1469 = vpow.pop %v1468
        %v1470 = vmul.f32 %v1359, 1.442695
        %v1471 = vpow.pop %v1470
        %v1472 = vmul.f32 %v1360, 1.442695
        %v1473 = vpow.pop %v1472
        %v1474 = vmul.f32 %v1361, 1.442695
        %v1475 = vpow.pop %v1474
        %v1476 = vmul.f32 %v1362, 1.442695
        %v1477 = vpow.pop %v1476
        %v1478 = vmul.f32 %v1363, 1.442695
        %v1479 = vpow.pop %v1478
        %v1480 = vmul.f32 %v1364, 1.442695
        %v1481 = vpow.pop %v1480
        %v1482 = vmul.f32 %v1365, 1.442695
        %v1483 = vpow.pop %v1482
        %v1484 = vmul.f32 %v1366, 1.442695
        %v1485 = vpow.pop %v1484
        %v1486 = vmul.f32 %v1367, 1.442695
        %v1487 = vpow.pop %v1486
        %v1488 = vmul.f32 %v1368, 1.442695
        %v1489 = vpow.pop %v1488
        %v1490 = vmul.f32 %v1369, 1.442695
        %v1491 = vpow.pop %v1490
        %v1492 = vmul.f32 %v1370, 1.442695
        %v1493 = vpow.pop %v1492
        %v1494 = vmul.f32 %v1371, 1.442695
        %v1495 = vpow.pop %v1494
        %v1496 = vmul.f32 %v1372, 1.442695
        %v1497 = vpow.pop %v1496
        %v1498 = vmul.f32 %v1373, 1.442695
        %v1499 = vpow.pop %v1498
        %v1500 = vmul.f32 %v1374, 1.442695
        %v1501 = vpow.pop %v1500
        %v1502 = vmul.f32 %v1375, 1.442695
        %v1503 = vpow.pop %v1502
        %v1504 = vadd.f32 %v1377, 1.0
        %v1505 = vadd.f32 %v1379, 1.0
        %v1506 = vadd.f32 %v1381, 1.0
        %v1507 = vadd.f32 %v1383, 1.0
        %v1508 = vadd.f32 %v1385, 1.0
        %v1509 = vadd.f32 %v1387, 1.0
        %v1510 = vadd.f32 %v1389, 1.0
        %v1511 = vadd.f32 %v1391, 1.0
        %v1512 = vadd.f32 %v1393, 1.0
        %v1513 = vadd.f32 %v1395, 1.0
        %v1514 = vadd.f32 %v1397, 1.0
        %v1515 = vadd.f32 %v1399, 1.0
        %v1516 = vadd.f32 %v1401, 1.0
        %v1517 = vadd.f32 %v1403, 1.0
        %v1518 = vadd.f32 %v1405, 1.0
        %v1519 = vadd.f32 %v1407, 1.0
        %v1520 = vadd.f32 %v1409, 1.0
        %v1521 = vadd.f32 %v1411, 1.0
        %v1522 = vadd.f32 %v1413, 1.0
        %v1523 = vadd.f32 %v1415, 1.0
        %v1524 = vadd.f32 %v1417, 1.0
        %v1525 = vadd.f32 %v1419, 1.0
        %v1526 = vadd.f32 %v1421, 1.0
        %v1527 = vadd.f32 %v1423, 1.0
        %v1528 = vadd.f32 %v1425, 1.0
        %v1529 = vadd.f32 %v1427, 1.0
        %v1530 = vadd.f32 %v1429, 1.0
        %v1531 = vadd.f32 %v1431, 1.0
        %v1532 = vadd.f32 %v1433, 1.0
        %v1533 = vadd.f32 %v1435, 1.0
        %v1534 = vadd.f32 %v1437, 1.0
        %v1535 = vadd.f32 %v1439, 1.0
        %v1536 = vadd.f32 %v1441, 1.0
        %v1537 = vadd.f32 %v1443, 1.0
        %v1538 = vadd.f32 %v1445, 1.0
        %v1539 = vadd.f32 %v1447, 1.0
        %v1540 = vadd.f32 %v1449, 1.0
        %v1541 = vadd.f32 %v1451, 1.0
        %v1542 = vadd.f32 %v1453, 1.0
        %v1543 = vadd.f32 %v1455, 1.0
        %v1544 = vadd.f32 %v1457, 1.0
        %v1545 = vadd.f32 %v1459, 1.0
        %v1546 = vadd.f32 %v1461, 1.0
        %v1547 = vadd.f32 %v1463, 1.0
        %v1548 = vadd.f32 %v1465, 1.0
        %v1549 = vadd.f32 %v1467, 1.0
        %v1550 = vadd.f32 %v1469, 1.0
        %v1551 = vadd.f32 %v1471, 1.0
        %v1552 = vadd.f32 %v1473, 1.0
        %v1553 = vadd.f32 %v1475, 1.0
        %v1554 = vadd.f32 %v1477, 1.0
        %v1555 = vadd.f32 %v1479, 1.0
        %v1556 = vadd.f32 %v1481, 1.0
        %v1557 = vadd.f32 %v1483, 1.0
        %v1558 = vadd.f32 %v1485, 1.0
        %v1559 = vadd.f32 %v1487, 1.0
        %v1560 = vadd.f32 %v1489, 1.0
        %v1561 = vadd.f32 %v1491, 1.0
        %v1562 = vadd.f32 %v1493, 1.0
        %v1563 = vadd.f32 %v1495, 1.0
        %v1564 = vadd.f32 %v1497, 1.0
        %v1565 = vadd.f32 %v1499, 1.0
        %v1566 = vadd.f32 %v1501, 1.0
        %v1567 = vadd.f32 %v1503, 1.0
        %v1568 = vrcp.pop %v1504
        %v1569 = vmul.f32 1.0, %v1568
        %v1570 = vrcp.pop %v1505
        %v1571 = vmul.f32 1.0, %v1570
        %v1572 = vrcp.pop %v1506
        %v1573 = vmul.f32 1.0, %v1572
        %v1574 = vrcp.pop %v1507
        %v1575 = vmul.f32 1.0, %v1574
        %v1576 = vrcp.pop %v1508
        %v1577 = vmul.f32 1.0, %v1576
        %v1578 = vrcp.pop %v1509
        %v1579 = vmul.f32 1.0, %v1578
        %v1580 = vrcp.pop %v1510
        %v1581 = vmul.f32 1.0, %v1580
        %v1582 = vrcp.pop %v1511
        %v1583 = vmul.f32 1.0, %v1582
        %v1584 = vrcp.pop %v1512
        %v1585 = vmul.f32 1.0, %v1584
        %v1586 = vrcp.pop %v1513
        %v1587 = vmul.f32 1.0, %v1586
        %v1588 = vrcp.pop %v1514
        %v1589 = vmul.f32 1.0, %v1588
        %v1590 = vrcp.pop %v1515
        %v1591 = vmul.f32 1.0, %v1590
        %v1592 = vrcp.pop %v1516
        %v1593 = vmul.f32 1.0, %v1592
        %v1594 = vrcp.pop %v1517
        %v1595 = vmul.f32 1.0, %v1594
        %v1596 = vrcp.pop %v1518
        %v1597 = vmul.f32 1.0, %v1596
        %v1598 = vrcp.pop %v1519
        %v1599 = vmul.f32 1.0, %v1598
        %v1600 = vrcp.pop %v1520
        %v1601 = vmul.f32 1.0, %v1600
        %v1602 = vrcp.pop %v1521
        %v1603 = vmul.f32 1.0, %v1602
        %v1604 = vrcp.pop %v1522
        %v1605 = vmul.f32 1.0, %v1604
        %v1606 = vrcp.pop %v1523
        %v1607 = vmul.f32 1.0, %v1606
        %v1608 = vrcp.pop %v1524
        %v1609 = vmul.f32 1.0, %v1608
        %v1610 = vrcp.pop %v1525
        %v1611 = vmul.f32 1.0, %v1610
        %v1612 = vrcp.pop %v1526
        %v1613 = vmul.f32 1.0, %v1612
        %v1614 = vrcp.pop %v1527
        %v1615 = vmul.f32 1.0, %v1614
        %v1616 = vrcp.pop %v1528
        %v1617 = vmul.f32 1.0, %v1616
        %v1618 = vrcp.pop %v1529
        %v1619 = vmul.f32 1.0, %v1618
        %v1620 = vrcp.pop %v1530
        %v1621 = vmul.f32 1.0, %v1620
        %v1622 = vrcp.pop %v1531
        %v1623 = vmul.f32 1.0, %v1622
        %v1624 = vrcp.pop %v1532
        %v1625 = vmul.f32 1.0, %v1624
        %v1626 = vrcp.pop %v1533
        %v1627 = vmul.f32 1.0, %v1626
        %v1628 = vrcp.pop %v1534
        %v1629 = vmul.f32 1.0, %v1628
        %v1630 = vrcp.pop %v1535
        %v1631 = vmul.f32 1.0, %v1630
        %v1632 = vrcp.pop %v1536
        %v1633 = vmul.f32 1.0, %v1632
        %v1634 = vrcp.pop %v1537
        %v1635 = vmul.f32 1.0, %v1634
        %v1636 = vrcp.pop %v1538
        %v1637 = vmul.f32 1.0, %v1636
        %v1638 = vrcp.pop %v1539
        %v1639 = vmul.f32 1.0, %v1638
        %v1640 = vrcp.pop %v1540
        %v1641 = vmul.f32 1.0, %v1640
        %v1642 = vrcp.pop %v1541
        %v1643 = vmul.f32 1.0, %v1642
        %v1644 = vrcp.pop %v1542
        %v1645 = vmul.f32 1.0, %v1644
        %v1646 = vrcp.pop %v1543
        %v1647 = vmul.f32 1.0, %v1646
        %v1648 = vrcp.pop %v1544
        %v1649 = vmul.f32 1.0, %v1648
        %v1650 = vrcp.pop %v1545
        %v1651 = vmul.f32 1.0, %v1650
        %v1652 = vrcp.pop %v1546
        %v1653 = vmul.f32 1.0, %v1652
        %v1654 = vrcp.pop %v1547
        %v1655 = vmul.f32 1.0, %v1654
        %v1656 = vrcp.pop %v1548
        %v1657 = vmul.f32 1.0, %v1656
        %v1658 = vrcp.pop %v1549
        %v1659 = vmul.f32 1.0, %v1658
        %v1660 = vrcp.pop %v1550
        %v1661 = vmul.f32 1.0, %v1660
        %v1662 = vrcp.pop %v1551
        %v1663 = vmul.f32 1.0, %v1662
        %v1664 = vrcp.pop %v1552
        %v1665 = vmul.f32 1.0, %v1664
        %v1666 = vrcp.pop %v1553
        %v1667 = vmul.f32 1.0, %v1666
        %v1668 = vrcp.pop %v1554
        %v1669 = vmul.f32 1.0, %v1668
        %v1670 = vrcp.pop %v1555
        %v1671 = vmul.f32 1.0, %v1670
        %v1672 = vrcp.pop %v1556
        %v1673 = vmul.f32 1.0, %v1672
        %v1674 = vrcp.pop %v1557
        %v1675 = vmul.f32 1.0, %v1674
        %v1676 = vrcp.pop %v1558
        %v1677 = vmul.f32 1.0, %v1676
        %v1678 = vrcp.pop %v1559
        %v1679 = vmul.f32 1.0, %v1678
        %v1680 = vrcp.pop %v1560
        %v1681 = vmul.f32 1.0, %v1680
        %v1682 = vrcp.pop %v1561
        %v1683 = vmul.f32 1.0, %v1682
        %v1684 = vrcp.pop %v1562
        %v1685 = vmul.f32 1.0, %v1684
        %v1686 = vrcp.pop %v1563
        %v1687 = vmul.f32 1.0, %v1686
        %v1688 = vrcp.pop %v1564
        %v1689 = vmul.f32 1.0, %v1688
        %v1690 = vrcp.pop %v1565
        %v1691 = vmul.f32 1.0, %v1690
        %v1692 = vrcp.pop %v1566
        %v1693 = vmul.f32 1.0, %v1692
        %v1694 = vrcp.pop %v1567
        %v1695 = vmul.f32 1.0, %v1694
        %1696 = vxpose.xlu0.b32.start [1/16] %v1569, 128
        %1697 = vxpose.xlu0.b32.cont [2/16] %v1571, 128
        %1698 = vxpose.xlu0.b32.cont [3/16] %v1573, 128
        %1699 = vxpose.xlu0.b32.cont [4/16] %v1575, 128
        %1700 = vxpose.xlu0.b32.cont [5/16] %v1577, 128
        %1701 = vxpose.xlu0.b32.cont [6/16] %v1579, 128
        %1702 = vxpose.xlu0.b32.cont [7/16] %v1581, 128
        %1703 = vxpose.xlu0.b32.cont [8/16] %v1583, 128
        %1704 = vxpose.xlu0.b32.cont [9/16] %v1585, 128
        %1705 = vxpose.xlu0.b32.cont [10/16] %v1587, 128
        %1706 = vxpose.xlu0.b32.cont [11/16] %v1589, 128
        %1707 = vxpose.xlu0.b32.cont [12/16] %v1591, 128
        %1708 = vxpose.xlu0.b32.cont [13/16] %v1593, 128
        %1709 = vxpose.xlu0.b32.cont [14/16] %v1595, 128
        %1710 = vxpose.xlu0.b32.cont [15/16] %v1597, 128
        %1711 = vxpose.xlu0.b32.end [16/16] %v1599, 128
        %v1712 = vpop.trf.xlu0
        %v1713 = vpop.trf.xlu0
        %v1714 = vpop.trf.xlu0
        %v1715 = vpop.trf.xlu0
        %v1716 = vpop.trf.xlu0
        %v1717 = vpop.trf.xlu0
        %v1718 = vpop.trf.xlu0
        %v1719 = vpop.trf.xlu0
        %v1720 = vpop.trf.xlu0
        %v1721 = vpop.trf.xlu0
        %v1722 = vpop.trf.xlu0
        %v1723 = vpop.trf.xlu0
        %v1724 = vpop.trf.xlu0
        %v1725 = vpop.trf.xlu0
        %v1726 = vpop.trf.xlu0
        %v1727 = vpop.trf.xlu0
        %1728 = vxpose.xlu0.b32.start [1/16] %v1601, 128
        %1729 = vxpose.xlu0.b32.cont [2/16] %v1603, 128
        %1730 = vxpose.xlu0.b32.cont [3/16] %v1605, 128
        %1731 = vxpose.xlu0.b32.cont [4/16] %v1607, 128
        %1732 = vxpose.xlu0.b32.cont [5/16] %v1609, 128
        %1733 = vxpose.xlu0.b32.cont [6/16] %v1611, 128
        %1734 = vxpose.xlu0.b32.cont [7/16] %v1613, 128
        %1735 = vxpose.xlu0.b32.cont [8/16] %v1615, 128
        %1736 = vxpose.xlu0.b32.cont [9/16] %v1617, 128
        %1737 = vxpose.xlu0.b32.cont [10/16] %v1619, 128
        %1738 = vxpose.xlu0.b32.cont [11/16] %v1621, 128
        %1739 = vxpose.xlu0.b32.cont [12/16] %v1623, 128
        %1740 = vxpose.xlu0.b32.cont [13/16] %v1625, 128
        %1741 = vxpose.xlu0.b32.cont [14/16] %v1627, 128
        %1742 = vxpose.xlu0.b32.cont [15/16] %v1629, 128
        %1743 = vxpose.xlu0.b32.end [16/16] %v1631, 128
        %v1744 = vpop.trf.xlu0
        %v1745 = vpop.trf.xlu0
        %v1746 = vpop.trf.xlu0
        %v1747 = vpop.trf.xlu0
        %v1748 = vpop.trf.xlu0
        %v1749 = vpop.trf.xlu0
        %v1750 = vpop.trf.xlu0
        %v1751 = vpop.trf.xlu0
        %v1752 = vpop.trf.xlu0
        %v1753 = vpop.trf.xlu0
        %v1754 = vpop.trf.xlu0
        %v1755 = vpop.trf.xlu0
        %v1756 = vpop.trf.xlu0
        %v1757 = vpop.trf.xlu0
        %v1758 = vpop.trf.xlu0
        %v1759 = vpop.trf.xlu0
        %1760 = vxpose.xlu0.b32.start [1/16] %v1633, 128
        %1761 = vxpose.xlu0.b32.cont [2/16] %v1635, 128
        %1762 = vxpose.xlu0.b32.cont [3/16] %v1637, 128
        %1763 = vxpose.xlu0.b32.cont [4/16] %v1639, 128
        %1764 = vxpose.xlu0.b32.cont [5/16] %v1641, 128
        %1765 = vxpose.xlu0.b32.cont [6/16] %v1643, 128
        %1766 = vxpose.xlu0.b32.cont [7/16] %v1645, 128
        %1767 = vxpose.xlu0.b32.cont [8/16] %v1647, 128
        %1768 = vxpose.xlu0.b32.cont [9/16] %v1649, 128
        %1769 = vxpose.xlu0.b32.cont [10/16] %v1651, 128
        %1770 = vxpose.xlu0.b32.cont [11/16] %v1653, 128
        %1771 = vxpose.xlu0.b32.cont [12/16] %v1655, 128
        %1772 = vxpose.xlu0.b32.cont [13/16] %v1657, 128
        %1773 = vxpose.xlu0.b32.cont [14/16] %v1659, 128
        %1774 = vxpose.xlu0.b32.cont [15/16] %v1661, 128
        %1775 = vxpose.xlu0.b32.end [16/16] %v1663, 128
        %v1776 = vpop.trf.xlu0
        %v1777 = vpop.trf.xlu0
        %v1778 = vpop.trf.xlu0
        %v1779 = vpop.trf.xlu0
        %v1780 = vpop.trf.xlu0
        %v1781 = vpop.trf.xlu0
        %v1782 = vpop.trf.xlu0
        %v1783 = vpop.trf.xlu0
        %v1784 = vpop.trf.xlu0
        %v1785 = vpop.trf.xlu0
        %v1786 = vpop.trf.xlu0
        %v1787 = vpop.trf.xlu0
        %v1788 = vpop.trf.xlu0
        %v1789 = vpop.trf.xlu0
        %v1790 = vpop.trf.xlu0
        %v1791 = vpop.trf.xlu0
        %1792 = vxpose.xlu0.b32.start [1/16] %v1665, 128
        %1793 = vxpose.xlu0.b32.cont [2/16] %v1667, 128
        %1794 = vxpose.xlu0.b32.cont [3/16] %v1669, 128
        %1795 = vxpose.xlu0.b32.cont [4/16] %v1671, 128
        %1796 = vxpose.xlu0.b32.cont [5/16] %v1673, 128
        %1797 = vxpose.xlu0.b32.cont [6/16] %v1675, 128
        %1798 = vxpose.xlu0.b32.cont [7/16] %v1677, 128
        %1799 = vxpose.xlu0.b32.cont [8/16] %v1679, 128
        %1800 = vxpose.xlu0.b32.cont [9/16] %v1681, 128
        %1801 = vxpose.xlu0.b32.cont [10/16] %v1683, 128
        %1802 = vxpose.xlu0.b32.cont [11/16] %v1685, 128
        %1803 = vxpose.xlu0.b32.cont [12/16] %v1687, 128
        %1804 = vxpose.xlu0.b32.cont [13/16] %v1689, 128
        %1805 = vxpose.xlu0.b32.cont [14/16] %v1691, 128
        %1806 = vxpose.xlu0.b32.cont [15/16] %v1693, 128
        %1807 = vxpose.xlu0.b32.end [16/16] %v1695, 128
        %v1808 = vpop.trf.xlu0
        %v1809 = vpop.trf.xlu0
        %v1810 = vpop.trf.xlu0
        %v1811 = vpop.trf.xlu0
        %v1812 = vpop.trf.xlu0
        %v1813 = vpop.trf.xlu0
        %v1814 = vpop.trf.xlu0
        %v1815 = vpop.trf.xlu0
        %v1816 = vpop.trf.xlu0
        %v1817 = vpop.trf.xlu0
        %v1818 = vpop.trf.xlu0
        %v1819 = vpop.trf.xlu0
        %v1820 = vpop.trf.xlu0
        %v1821 = vpop.trf.xlu0
        %v1822 = vpop.trf.xlu0
        %v1823 = vpop.trf.xlu0
        %v1828 = vcombine.low %v1712, %v1744
        %v1829 = vcombine.low %v1776, %v1808
        %v1831 = vunpack.c.l.s4 1966171168
        %v1832 = vunpack.c.0.s8 %v1831
        %v1833 = vlaneseq
        %v1834 = vshrl.u32 %v1833, 7
        %v1835 = vsub.s32 %v1832, %v1834
        %v1836 = vrot.slane %v1828, %v1835
        %v1838 = vunpack.c.l.s4 1966171168
        %v1839 = vunpack.c.0.s8 %v1838
        %v1840 = vlaneseq
        %v1841 = vshrl.u32 %v1840, 7
        %v1842 = vsub.s32 %v1839, %v1841
        %v1843 = vrot.slane %v1829, %v1842
        %v1844 = vcombine.low %v1836, %v1843
        %v1846 = vunpack.c.l.s4 1966171168
        %v1847 = vunpack.c.0.s8 %v1846
        %v1848 = vlaneseq
        %v1849 = vshrl.u32 %v1848, 7
        %v1850 = vsub.s32 %v1847, %v1849
        %v1851 = vrot.slane %v1844, %v1850
        %v1853 = vlaneseq
        %vm1854 = vcmp.ge.s32.totalorder %v1853, 0
        %vm1855 = vcmp.lt.s32.totalorder %v1853, 512
        %vm1856 = vmand %vm1854, %vm1855
        %1857 = vst.msk [vmem:[%s254] sm:$0xf] %vm1856, %v1851
        %s1858 = smul.u32 64, %s22
        %p1859 = scmp.lt.s32.totalorder %s1858, 127
        %s1860 = scalar_select %p1859, %s1858, 127
        %s1861 = smul.addr %s1860, 8
        %s1862 = scalar_lea.vmem %s5, %s1861
        %s1863 = sand.u32 %s166, 1
        %s1864 = scalar_lea.sflag [#allocation4], %s1863
        %s1865 = sand.u32 %s166, 1
        %s1866 = smul.addr %s1865, 4
        %s1867 = scalar_lea.vmem [#allocation3], %s1866
        // Predicated region
        $region41: #{neuralnet_forward.1} parent=39 // pred_check
          %p1868 = pneg %p150
        $region42: #{neuralnet_forward.1} parent=39 // pred_check_branch
          %1870 = sbr.rel (%p1868) target = $region44
        $region43: #{neuralnet_forward.1} parent=39 // pred_region
          %s1871 = smul.u32 64, %s22
        $region44: #{neuralnet_forward.1} parent=39 // pred_fallthru
          _
        // Predicated region
        $region45: #{neuralnet_forward.1} parent=39 // pred_check
          %p1872 = pneg %p176
        $region46: #{neuralnet_forward.1} parent=39 // pred_check_branch
          %1874 = sbr.rel (%p1872) target = $region48
        $region47: #{neuralnet_forward.1} parent=39 // pred_region
          %s1876 = ssub.s32 64, 64
          %1877 = vsyncadd %s1864, %s1876
          %s1878 = smul.addr %s22, 4
          %s1879 = smul.addr %s1878, 16
          %s1880 = scalar_lea.hbm %s6, %s1879
          %s1882 = sshll.u32 %s1867, 4
          %s1883 = int_to_ptr.vmem [resolvable:$true] %s1882
          %1885 = dma.vmem_to_hbm [thread:$0]  %s1883, 64, %s1880, %s1864
        $region48: #{neuralnet_forward.1} parent=39 // pred_fallthru
          _
      $region40: #{neuralnet_forward.1} parent=5 // pred_fallthru
        _
      %p1886 = scmp.le.s32.totalorder 2, %s17
      // Predicated region
      $region49: #{neuralnet_forward.1} parent=5 // pred_check
        %p1887 = pneg %p1886
      $region50: #{neuralnet_forward.1} parent=5 // pred_check_branch
        %1889 = sbr.rel (%p1887) target = $region52
      $region51: #{neuralnet_forward.1} parent=5 // pred_region
        %s1890 = ssub.s32 %s17, 2
        // Predicated region
        $region53: #{neuralnet_forward.1} parent=51 // pred_check
          %p1891 = pneg %p156
        $region54: #{neuralnet_forward.1} parent=51 // pred_check_branch
          %1893 = sbr.rel (%p1891) target = $region56
        $region55: #{neuralnet_forward.1} parent=51 // pred_region
          %s1894 = smul.u32 64, %s23
          %p1895 = scmp.lt.s32.totalorder %s1894, 127
          %s1896 = scalar_select %p1895, %s1894, 127
          %s1897 = smul.addr %s1896, 8
          %s1898 = scalar_lea.vmem %s5, %s1897
        $region56: #{neuralnet_forward.1} parent=51 // pred_fallthru
          _
        // Predicated region
        $region57: #{neuralnet_forward.1} parent=51 // pred_check
          %p1899 = pneg %p182
        $region58: #{neuralnet_forward.1} parent=51 // pred_check_branch
          %1901 = sbr.rel (%p1899) target = $region60
        $region59: #{neuralnet_forward.1} parent=51 // pred_region
          %s1902 = sand.u32 %s167, 1
          %s1903 = scalar_lea.sflag [#allocation4], %s1902
          %s1904 = sand.u32 %s167, 1
          %s1905 = smul.addr %s1904, 4
          %s1906 = scalar_lea.vmem [#allocation3], %s1905
          %1907 = dma.done %s1903, 64
        $region60: #{neuralnet_forward.1} parent=51 // pred_fallthru
          _
      $region52: #{neuralnet_forward.1} parent=5 // pred_fallthru
        _
    $region6: #{neuralnet_forward.1} parent=1 // loop_footer
      %s21 = sadd.s32 1, %s17
    $region7: #{neuralnet_forward.1} parent=1 // loop_footer_branch
      %16 = sbr.rel target = $region3
    $region8: #{neuralnet_forward.1} parent=1 // loop_exit
      _
    %1908 = vsyncpa [#allocation4], 1
    %s1909 = scalar_lea.sflag [#allocation4], 1
    %1910 = vsyncpa %s1909, 1

</llo_original>
